<compile_context>
chip_gen: v7x
topology: tpu7x:2x2x1
jax: 0.10.0
libtpu: 0.0.40
codegen_flags: <defaults>
</compile_context>

<pallas_src>
import functools

import jax
import jax.numpy as jnp
import numpy as np
from jax.experimental import pallas as pl
from jax.experimental.pallas import tpu as pltpu

LANES = 128          # activation frame width (last dim of every tile)
ONES_LANE = 127      # constant-1 lane feeding bias / treat / ones weight rows


def _round_up(n, m):
    return ((n + m - 1) // m) * m


# ----------------------- truncated-power treatment basis --------------------------
def _tp_basis_cols(t, degree, knots):
    """Columns of the Truncated_power basis, each with t's shape (f32, VPU only)."""
    cols = [jnp.ones_like(t)]
    p = t
    for j in range(1, degree + 1):
        cols.append(p)
        if j < degree:
            p = p * t
    for kn in knots:
        r = jnp.maximum(t - kn, 0.0)
        q = r
        for _ in range(degree - 1):
            q = q * r
        cols.append(q)
    return cols


def _apply_act(v, act):
    if act == 'relu':
        return jnp.maximum(v, 0.0)
    if act in ('id', 'none', None):
        return v
    if act == 'tanh':
        return jnp.tanh(v)
    if act == 'sigmoid':
        return jax.nn.sigmoid(v)
    raise ValueError(f"unsupported activation: {act}")


# ------------------------------- fused Q-head kernel ------------------------------
def _q_head_kernel(x_ref, w_ref, out_ref, *, layer_meta, degree, knots, d):
    """x_ref:   (tb, 128)  frame = [t, features..., 0-pad, 1 @ lane 127]
       w_ref:   (L*d, 128, 128) packed per-layer / per-basis weight blocks (resident)
       out_ref: (tb, 128)  last layer's frame (result in lanes 0..outd-1)."""
    h = x_ref[...]                                   # (tb, 128) f32 activation frame
    cd = w_ref.dtype                                 # matmul operand dtype (f32 / bf16)

    for l, (act, islast, folded) in enumerate(layer_meta):
        t = h[:, 0:1]                                # (tb, 1) treatment
        cols = _tp_basis_cols(t, degree, knots)      # d basis columns, f32 (VPU)

        # out = sum_k (basis_k * h) @ W[l,k]  -- d aligned MXU matmuls, f32 accumulate
        acc = None
        for k in range(d):
            zk = h if k == 0 else cols[k] * h        # basis_0 == 1 identically
            if cd != jnp.float32:
                zk = zk.astype(cd)                   # cast only the matmul operand
            part = jnp.dot(zk, w_ref[l * d + k],
                           preferred_element_type=jnp.float32)
            acc = part if acc is None else acc + part

        h = _apply_act(acc, act)

        # For relu / id hidden layers the treat lane (0) and the constant-1 lane (127)
        # are regenerated by folded weight entries.  Only tanh/sigmoid hidden layers
        # need an explicit fix-up (not used by standard VCNet configs).
        if (not islast) and (not folded):
            lane = jax.lax.broadcasted_iota(jnp.int32, h.shape, 1)
            h = jnp.where(lane == 0, t, h)
            h = jnp.where(lane == ONES_LANE, jnp.float32(1.0), h)

    out_ref[...] = h.astype(out_ref.dtype)


# ---------------------------- parameter packing (once) ----------------------------
def pack_q_head_params(layers, *, degree=2, knots=(0.33, 0.66), dtype=jnp.float32):
    """layers: list of (weight (ind,outd,d), bias (outd,d) | None, islastlayer,
                        residual, act) in execution order.
       Returns (w_stack (L*d, 128, 128) in `dtype`, layer_meta static tuple)."""
    d = degree + 1 + len(knots)
    L = len(layers)
    w_stack = np.zeros((L, d, LANES, LANES), np.float32)
    meta = []
    prev_outd = None

    for l, (weight, bias, islast, residual, act) in enumerate(layers):
        W = np.asarray(weight, np.float32)           # (ind, outd, d)
        ind, outd, dd = W.shape
        assert dd == d, "basis size mismatch"
        col_off = 0 if islast else 1
        assert 1 + ind <= ONES_LANE, "ind must be <= 126"
        assert col_off + outd <= (LANES if islast else ONES_LANE), "outd too large"
        if prev_outd is not None:
            assert ind == prev_outd, "chained layer widths must match"

        B_ = None if bias is None else np.asarray(bias, np.float32)   # (outd, d)
        for k in range(d):
            w_stack[l, k, 1:1 + ind, col_off:col_off + outd] = W[:, :, k]
            if B_ is not None:
                w_stack[l, k, ONES_LANE, col_off:col_off + outd] = B_[:, k]

        if residual:                                  # out += x_feature (needs ind==outd)
            assert ind == outd, "residual=1 requires ind == outd"
            w_stack[l, 0, 1:1 + ind, col_off:col_off + outd] += np.eye(ind, dtype=np.float32)

        folded = True
        if not islast:
            if act in ('relu', 'id', 'none', None):
                # treat (>=0) pass-through into lane 0:  basis_1 * ones-lane -> t
                w_stack[l, 1, ONES_LANE, 0] = 1.0
                # constant-1 regeneration into lane 127: basis_0 * ones-lane -> 1
                w_stack[l, 0, ONES_LANE, ONES_LANE] = 1.0
            else:
                folded = False                        # kernel fixes lanes 0/127 after act
        meta.append((act, bool(islast), folded))
        prev_outd = outd

    return jnp.asarray(w_stack.reshape(L * d, LANES, LANES), dtype), tuple(meta)


# ------------------------------ Pallas-backed forward -----------------------------
@functools.partial(jax.jit,
                   static_argnames=("layer_meta", "out_dim", "degree", "knots", "tb"))
def q_head_forward(x, w_stack, *, layer_meta, out_dim, degree=2, knots=(0.33, 0.66),
                   tb=None):
    """x: (B, 1+ind0) = cat(t, hidden).  Returns (B, out_dim) = Q(t_hidden)."""
    B, in_w = x.shape
    assert in_w <= ONES_LANE
    d = degree + 1 + len(knots)
    L = len(layer_meta)
    assert w_stack.shape == (L * d, LANES, LANES)

    if tb is None:
        b8 = _round_up(max(B, 8), 8)
        # >=2 batch tiles so the "parallel" grid axis shards across v7x's two
        # TensorCores; cap at 1024 rows (HBM-roofline sweet spot, tiny VMEM need).
        tb = max(8, min(1024, _round_up((b8 + 1) // 2, 8)))
    b_pad = _round_up(max(B, 8), tb)

    # 128-lane input frame: [t, features, 0-pad, 1 @ lane 127]; padded rows all-zero,
    # so they stay exactly zero through every layer (bias hooks on the ones lane).
    xp = jnp.zeros((b_pad, LANES), jnp.float32)
    xp = xp.at[:B, :in_w].set(x.astype(jnp.float32))
    xp = xp.at[:B, ONES_LANE].set(1.0)

    grid = (b_pad // tb,)
    kernel = functools.partial(_q_head_kernel, layer_meta=layer_meta,
                               degree=degree, knots=knots, d=d)

    w_bytes = int(np.prod(w_stack.shape)) * jnp.dtype(w_stack.dtype).itemsize
    cost = pl.CostEstimate(
        flops=2 * b_pad * LANES * LANES * L * d,
        transcendentals=0,
        bytes_accessed=b_pad * LANES * 4 * 2 + w_bytes)

    out = pl.pallas_call(
        kernel,
        out_shape=jax.ShapeDtypeStruct((b_pad, LANES), jnp.float32),
        grid_spec=pltpu.PrefetchScalarGridSpec(
            num_scalar_prefetch=0,
            grid=grid,
            in_specs=[
                pl.BlockSpec((tb, LANES), lambda i: (i, 0)),              # streamed tile
                pl.BlockSpec((L * d, LANES, LANES), lambda i: (0, 0, 0)),  # resident weights
            ],
            out_specs=pl.BlockSpec((tb, LANES), lambda i: (i, 0)),
        ),
        compiler_params=pltpu.CompilerParams(dimension_semantics=("parallel",)),
        cost_estimate=cost,
    )(xp, w_stack)

    return out[:B, :out_dim]


# ------------------------- pure-JAX reference (for checking) ----------------------
def q_head_reference(x, layers, *, degree=2, knots=(0.33, 0.66)):
    h = x.astype(jnp.float32)
    for (weight, bias, islast, residual, act) in layers:
        t = h[:, 0]
        xf = h[:, 1:]
        basis = jnp.stack(_tp_basis_cols(t, degree, knots), axis=1)       # (B, d)
        out = jnp.einsum('iok,bi,bk->bo', weight, xf, basis,
                         precision=jax.lax.Precision.HIGHEST)
        if bias is not None:
            out = out + jnp.matmul(basis, bias.T,
                                   precision=jax.lax.Precision.HIGHEST)
        if residual:
            out = out + xf
        out = _apply_act(out, act)
        if not islast:
            out = jnp.concatenate([t[:, None], out], axis=1)
        h = out
    return h


# ------------------------------------- main ---------------------------------------
if __name__ == "__main__":
    DEGREE, KNOTS = 2, (0.33, 0.66)
    D = DEGREE + 1 + len(KNOTS)                 # num_of_basis = 5
    B = 45                                      # not a multiple of 8 -> exercises padding
    IND0, HID, OUTD = 50, 50, 1                 # VCNet Q-head cfg [(50,50,1,'relu'),(50,1,1,'id')]

    key = jax.random.PRNGKey(0)
    ks = jax.random.split(key, 8)
    t = jax.random.uniform(ks[0], (B, 1), dtype=jnp.float32)             # treatment in [0,1)
    hidden = jax.random.uniform(ks[1], (B, IND0), dtype=jnp.float32)     # density-net features
    x = jnp.concatenate([t, hidden], axis=1)                             # t_hidden = cat(t, hidden)

    w1 = jax.random.uniform(ks[2], (IND0, HID, D), dtype=jnp.float32)    # torch.rand-style init
    b1 = jax.random.uniform(ks[3], (HID, D), dtype=jnp.float32)
    w2 = jax.random.uniform(ks[4], (HID, OUTD, D), dtype=jnp.float32)
    b2 = jax.random.uniform(ks[5], (OUTD, D), dtype=jnp.float32)
    w1b = jax.random.uniform(ks[6], (HID, HID, D), dtype=jnp.float32)
    b1b = jax.random.uniform(ks[7], (HID, D), dtype=jnp.float32)

    configs = [
        # name, weight dtype, layer list: (weight, bias, islastlayer, residual, act)
        ("std_2layer_f32", jnp.float32,
         [(w1, b1, 0, 0, 'relu'), (w2, b2, 1, 0, 'id')], 1e-3, 1e-3),
        ("residual_3layer_f32", jnp.float32,
         [(w1, b1, 0, 0, 'relu'), (w1b, b1b, 0, 1, 'relu'), (w2, b2, 1, 0, 'id')],
         1e-3, 1e-3),
        # bf16 operand packing (v6e/v7x recommendation); f32 accumulate -> loose tol
        ("std_2layer_bf16", jnp.bfloat16,
         [(w1, b1, 0, 0, 'relu'), (w2, b2, 1, 0, 'id')], 5e-2, 5e-1),
    ]

    for name, dtype, layers, rtol, atol in configs:
        w_stack, meta = pack_q_head_params(layers, degree=DEGREE, knots=KNOTS, dtype=dtype)
        out = q_head_forward(x, w_stack, layer_meta=meta,
                             out_dim=layers[-1][0].shape[1],
                             degree=DEGREE, knots=KNOTS)
        out = jax.block_until_ready(out)
        ref = q_head_reference(x, layers, degree=DEGREE, knots=KNOTS)
        np.testing.assert_allclose(np.asarray(out), np.asarray(ref),
                                   rtol=rtol, atol=atol, err_msg=name)

    print("KERNEL_OK")
</pallas_src>

<mosaic_0001>
module attributes {stable_mosaic.version = 11 : i64} {
  func.func @_q_head_kernel(%arg0: i32, %arg1: memref<24x128xf32, #tpu.memory_space<vmem>>, %arg2: memref<10x128x128xf32, #tpu.memory_space<vmem>>, %arg3: memref<24x128xf32, #tpu.memory_space<vmem>>) attributes {dimension_semantics = [#tpu.dimension_semantics<parallel>], iteration_bounds = array<i64: 2>, scalar_prefetch = 0 : i64, scratch_operands = 0 : i64, tpu.core_type = #tpu.core_type<tc>, window_params = [{transform_indices = @transform_0, window_bounds = array<i64: 24, 128>}, {pipeline_mode = #tpu.pipeline_mode<synchronous>, transform_indices = @transform_1, window_bounds = array<i64: 10, 128, 128>}, {transform_indices = @transform_2, window_bounds = array<i64: 24, 128>}]} {
    %c0 = arith.constant 0 : index
    %c0_0 = arith.constant 0 : index
    %0 = vector.load %arg1[%c0, %c0_0] : memref<24x128xf32, #tpu.memory_space<vmem>>, vector<24x128xf32>
    %1 = vector.extract_strided_slice %0 {offsets = [0, 0], sizes = [24, 1], strides = [1, 1]} : vector<24x128xf32> to vector<24x1xf32>
    %2 = arith.mulf %1, %1 : vector<24x1xf32>
    %cst = arith.constant 3.300000e-01 : f32
    %3 = vector.broadcast %cst : f32 to vector<24x1xf32>
    %4 = arith.subf %1, %3 : vector<24x1xf32>
    %cst_1 = arith.constant 0.000000e+00 : f32
    %5 = vector.broadcast %cst_1 : f32 to vector<24x1xf32>
    %6 = arith.maximumf %4, %5 : vector<24x1xf32>
    %7 = arith.mulf %6, %6 : vector<24x1xf32>
    %cst_2 = arith.constant 6.600000e-01 : f32
    %8 = vector.broadcast %cst_2 : f32 to vector<24x1xf32>
    %9 = arith.subf %1, %8 : vector<24x1xf32>
    %cst_3 = arith.constant 0.000000e+00 : f32
    %10 = vector.broadcast %cst_3 : f32 to vector<24x1xf32>
    %11 = arith.maximumf %9, %10 : vector<24x1xf32>
    %12 = arith.mulf %11, %11 : vector<24x1xf32>
    %c0_4 = arith.constant 0 : index
    %c0_5 = arith.constant 0 : index
    %c0_6 = arith.constant 0 : index
    %13 = vector.load %arg2[%c0_4, %c0_5, %c0_6] : memref<10x128x128xf32, #tpu.memory_space<vmem>>, vector<1x128x128xf32>
    %14 = vector.shape_cast %13 : vector<1x128x128xf32> to vector<128x128xf32>
    %cst_7 = arith.constant dense<0.000000e+00> : vector<24x128xf32>
    %15 = tpu.matmul %0, %14, %cst_7 {dimension_numbers = #tpu.dot_dimension_numbers<[1], [0], [0], [1], [0, 0, 1, 1], [], []>} : vector<24x128xf32>, vector<128x128xf32>, vector<24x128xf32> -> vector<24x128xf32>
    %16 = vector.broadcast %1 : vector<24x1xf32> to vector<24x128xf32>
    %17 = arith.mulf %16, %0 : vector<24x128xf32>
    %c1 = arith.constant 1 : index
    %c0_8 = arith.constant 0 : index
    %c0_9 = arith.constant 0 : index
    %18 = vector.load %arg2[%c1, %c0_8, %c0_9] : memref<10x128x128xf32, #tpu.memory_space<vmem>>, vector<1x128x128xf32>
    %19 = vector.shape_cast %18 : vector<1x128x128xf32> to vector<128x128xf32>
    %cst_10 = arith.constant dense<0.000000e+00> : vector<24x128xf32>
    %20 = tpu.matmul %17, %19, %cst_10 {dimension_numbers = #tpu.dot_dimension_numbers<[1], [0], [0], [1], [0, 0, 1, 1], [], []>} : vector<24x128xf32>, vector<128x128xf32>, vector<24x128xf32> -> vector<24x128xf32>
    %21 = arith.addf %15, %20 : vector<24x128xf32>
    %22 = vector.broadcast %2 : vector<24x1xf32> to vector<24x128xf32>
    %23 = arith.mulf %22, %0 : vector<24x128xf32>
    %c2 = arith.constant 2 : index
    %c0_11 = arith.constant 0 : index
    %c0_12 = arith.constant 0 : index
    %24 = vector.load %arg2[%c2, %c0_11, %c0_12] : memref<10x128x128xf32, #tpu.memory_space<vmem>>, vector<1x128x128xf32>
    %25 = vector.shape_cast %24 : vector<1x128x128xf32> to vector<128x128xf32>
    %cst_13 = arith.constant dense<0.000000e+00> : vector<24x128xf32>
    %26 = tpu.matmul %23, %25, %cst_13 {dimension_numbers = #tpu.dot_dimension_numbers<[1], [0], [0], [1], [0, 0, 1, 1], [], []>} : vector<24x128xf32>, vector<128x128xf32>, vector<24x128xf32> -> vector<24x128xf32>
    %27 = arith.addf %21, %26 : vector<24x128xf32>
    %28 = vector.broadcast %7 : vector<24x1xf32> to vector<24x128xf32>
    %29 = arith.mulf %28, %0 : vector<24x128xf32>
    %c3 = arith.constant 3 : index
    %c0_14 = arith.constant 0 : index
    %c0_15 = arith.constant 0 : index
    %30 = vector.load %arg2[%c3, %c0_14, %c0_15] : memref<10x128x128xf32, #tpu.memory_space<vmem>>, vector<1x128x128xf32>
    %31 = vector.shape_cast %30 : vector<1x128x128xf32> to vector<128x128xf32>
    %cst_16 = arith.constant dense<0.000000e+00> : vector<24x128xf32>
    %32 = tpu.matmul %29, %31, %cst_16 {dimension_numbers = #tpu.dot_dimension_numbers<[1], [0], [0], [1], [0, 0, 1, 1], [], []>} : vector<24x128xf32>, vector<128x128xf32>, vector<24x128xf32> -> vector<24x128xf32>
    %33 = arith.addf %27, %32 : vector<24x128xf32>
    %34 = vector.broadcast %12 : vector<24x1xf32> to vector<24x128xf32>
    %35 = arith.mulf %34, %0 : vector<24x128xf32>
    %c4 = arith.constant 4 : index
    %c0_17 = arith.constant 0 : index
    %c0_18 = arith.constant 0 : index
    %36 = vector.load %arg2[%c4, %c0_17, %c0_18] : memref<10x128x128xf32, #tpu.memory_space<vmem>>, vector<1x128x128xf32>
    %37 = vector.shape_cast %36 : vector<1x128x128xf32> to vector<128x128xf32>
    %cst_19 = arith.constant dense<0.000000e+00> : vector<24x128xf32>
    %38 = tpu.matmul %35, %37, %cst_19 {dimension_numbers = #tpu.dot_dimension_numbers<[1], [0], [0], [1], [0, 0, 1, 1], [], []>} : vector<24x128xf32>, vector<128x128xf32>, vector<24x128xf32> -> vector<24x128xf32>
    %39 = arith.addf %33, %38 : vector<24x128xf32>
    %cst_20 = arith.constant 0.000000e+00 : f32
    %40 = vector.broadcast %cst_20 : f32 to vector<24x128xf32>
    %41 = arith.maximumf %39, %40 : vector<24x128xf32>
    %42 = vector.extract_strided_slice %41 {offsets = [0, 0], sizes = [24, 1], strides = [1, 1]} : vector<24x128xf32> to vector<24x1xf32>
    %43 = arith.mulf %42, %42 : vector<24x1xf32>
    %cst_21 = arith.constant 3.300000e-01 : f32
    %44 = vector.broadcast %cst_21 : f32 to vector<24x1xf32>
    %45 = arith.subf %42, %44 : vector<24x1xf32>
    %cst_22 = arith.constant 0.000000e+00 : f32
    %46 = vector.broadcast %cst_22 : f32 to vector<24x1xf32>
    %47 = arith.maximumf %45, %46 : vector<24x1xf32>
    %48 = arith.mulf %47, %47 : vector<24x1xf32>
    %cst_23 = arith.constant 6.600000e-01 : f32
    %49 = vector.broadcast %cst_23 : f32 to vector<24x1xf32>
    %50 = arith.subf %42, %49 : vector<24x1xf32>
    %cst_24 = arith.constant 0.000000e+00 : f32
    %51 = vector.broadcast %cst_24 : f32 to vector<24x1xf32>
    %52 = arith.maximumf %50, %51 : vector<24x1xf32>
    %53 = arith.mulf %52, %52 : vector<24x1xf32>
    %c5 = arith.constant 5 : index
    %c0_25 = arith.constant 0 : index
    %c0_26 = arith.constant 0 : index
    %54 = vector.load %arg2[%c5, %c0_25, %c0_26] : memref<10x128x128xf32, #tpu.memory_space<vmem>>, vector<1x128x128xf32>
    %55 = vector.shape_cast %54 : vector<1x128x128xf32> to vector<128x128xf32>
    %cst_27 = arith.constant dense<0.000000e+00> : vector<24x128xf32>
    %56 = tpu.matmul %41, %55, %cst_27 {dimension_numbers = #tpu.dot_dimension_numbers<[1], [0], [0], [1], [0, 0, 1, 1], [], []>} : vector<24x128xf32>, vector<128x128xf32>, vector<24x128xf32> -> vector<24x128xf32>
    %57 = vector.broadcast %42 : vector<24x1xf32> to vector<24x128xf32>
    %58 = arith.mulf %57, %41 : vector<24x128xf32>
    %c6 = arith.constant 6 : index
    %c0_28 = arith.constant 0 : index
    %c0_29 = arith.constant 0 : index
    %59 = vector.load %arg2[%c6, %c0_28, %c0_29] : memref<10x128x128xf32, #tpu.memory_space<vmem>>, vector<1x128x128xf32>
    %60 = vector.shape_cast %59 : vector<1x128x128xf32> to vector<128x128xf32>
    %cst_30 = arith.constant dense<0.000000e+00> : vector<24x128xf32>
    %61 = tpu.matmul %58, %60, %cst_30 {dimension_numbers = #tpu.dot_dimension_numbers<[1], [0], [0], [1], [0, 0, 1, 1], [], []>} : vector<24x128xf32>, vector<128x128xf32>, vector<24x128xf32> -> vector<24x128xf32>
    %62 = arith.addf %56, %61 : vector<24x128xf32>
    %63 = vector.broadcast %43 : vector<24x1xf32> to vector<24x128xf32>
    %64 = arith.mulf %63, %41 : vector<24x128xf32>
    %c7 = arith.constant 7 : index
    %c0_31 = arith.constant 0 : index
    %c0_32 = arith.constant 0 : index
    %65 = vector.load %arg2[%c7, %c0_31, %c0_32] : memref<10x128x128xf32, #tpu.memory_space<vmem>>, vector<1x128x128xf32>
    %66 = vector.shape_cast %65 : vector<1x128x128xf32> to vector<128x128xf32>
    %cst_33 = arith.constant dense<0.000000e+00> : vector<24x128xf32>
    %67 = tpu.matmul %64, %66, %cst_33 {dimension_numbers = #tpu.dot_dimension_numbers<[1], [0], [0], [1], [0, 0, 1, 1], [], []>} : vector<24x128xf32>, vector<128x128xf32>, vector<24x128xf32> -> vector<24x128xf32>
    %68 = arith.addf %62, %67 : vector<24x128xf32>
    %69 = vector.broadcast %48 : vector<24x1xf32> to vector<24x128xf32>
    %70 = arith.mulf %69, %41 : vector<24x128xf32>
    %c8 = arith.constant 8 : index
    %c0_34 = arith.constant 0 : index
    %c0_35 = arith.constant 0 : index
    %71 = vector.load %arg2[%c8, %c0_34, %c0_35] : memref<10x128x128xf32, #tpu.memory_space<vmem>>, vector<1x128x128xf32>
    %72 = vector.shape_cast %71 : vector<1x128x128xf32> to vector<128x128xf32>
    %cst_36 = arith.constant dense<0.000000e+00> : vector<24x128xf32>
    %73 = tpu.matmul %70, %72, %cst_36 {dimension_numbers = #tpu.dot_dimension_numbers<[1], [0], [0], [1], [0, 0, 1, 1], [], []>} : vector<24x128xf32>, vector<128x128xf32>, vector<24x128xf32> -> vector<24x128xf32>
    %74 = arith.addf %68, %73 : vector<24x128xf32>
    %75 = vector.broadcast %53 : vector<24x1xf32> to vector<24x128xf32>
    %76 = arith.mulf %75, %41 : vector<24x128xf32>
    %c9 = arith.constant 9 : index
    %c0_37 = arith.constant 0 : index
    %c0_38 = arith.constant 0 : index
    %77 = vector.load %arg2[%c9, %c0_37, %c0_38] : memref<10x128x128xf32, #tpu.memory_space<vmem>>, vector<1x128x128xf32>
    %78 = vector.shape_cast %77 : vector<1x128x128xf32> to vector<128x128xf32>
    %cst_39 = arith.constant dense<0.000000e+00> : vector<24x128xf32>
    %79 = tpu.matmul %76, %78, %cst_39 {dimension_numbers = #tpu.dot_dimension_numbers<[1], [0], [0], [1], [0, 0, 1, 1], [], []>} : vector<24x128xf32>, vector<128x128xf32>, vector<24x128xf32> -> vector<24x128xf32>
    %80 = arith.addf %74, %79 : vector<24x128xf32>
    %c0_40 = arith.constant 0 : index
    %c0_41 = arith.constant 0 : index
    %81 = vector.load %arg3[%c0_40, %c0_41] : memref<24x128xf32, #tpu.memory_space<vmem>>, vector<24x128xf32>
    tpu.vector_store %arg3[%c0_40, %c0_41], %80 {strides = array<i32>} : memref<24x128xf32, #tpu.memory_space<vmem>>, vector<24x128xf32>,
    return
  }
  func.func @transform_0(%arg0: i32) -> (i32, i32) {
    %c0_i32 = arith.constant 0 : i32
    %c0_i32_0 = arith.constant 0 : i32
    return %arg0, %c0_i32 : i32, i32
  }
  func.func @transform_1(%arg0: i32) -> (i32, i32, i32) {
    %c0_i32 = arith.constant 0 : i32
    %c0_i32_0 = arith.constant 0 : i32
    %c0_i32_1 = arith.constant 0 : i32
    %c0_i32_2 = arith.constant 0 : i32
    return %c0_i32, %c0_i32_0, %c0_i32_1 : i32, i32, i32
  }
  func.func @transform_2(%arg0: i32) -> (i32, i32) {
    %c0_i32 = arith.constant 0 : i32
    %c0_i32_0 = arith.constant 0 : i32
    return %arg0, %c0_i32 : i32, i32
  }
}

</mosaic_0001>

<llo_original>
// kernel: q_head_forward.1
$region0: #{q_head_forward.1}
  #allocation0 [shape = 'u32[]', space=smem, size = 0x4, offset = 0x4, fixed_abs, tag = 'smem constant byte address 0x4 - core index']
  #allocation1 [shape = 'u32[144,128]{1,0:T(1,128)}', space=vmem, size = 0x12000, scoped, tag = 'internal scratch']
  %s0 = inlined_call_operand.vmem [shape: f32[48,128], index: 0, kind: input, shape index: {}]
  %s1 = inlined_call_operand.hbm [shape: f32[10,128,128], index: 1, kind: input, shape index: {}]
  %s2 = inlined_call_operand.vmem [shape: f32[48,128], index: 2, kind: output, shape index: {}]
  %s3 = sld [smem:[#allocation0]]
  $region45: #{q_head_forward.1} parent=0
    _
  %s5 = ssub.s32 1, %s3
  %s6 = scalar_select 0, %s5, %s3
  $region1: #{q_head_forward.1} parent=0
    #allocation2 [shape = 'u8[655360]{0}', space=vmem, size = 0xa0000, scoped, tag = 'input window, operand 1, single buffered']
    #allocation3 [shape = 's32[2]{0}', space=sflag, size = 0x8, scoped, tag = 'scoped memory for q_head_forward.1']
    %7 = vsyncpa [#allocation3], 0
    loop: start=0, step=1, limit=4
    $region2: #{q_head_forward.1} parent=1 // loop_pre_header
      _
    $region3: #{q_head_forward.1} parent=1 // loop_header
      %s9 = sphi 0, %s13
      %p10 = scmp.ge.s32.totalorder %s9, 4
      %s19 = sphi 0, %s21
      %s22 = sphi 0, %s19
      %s23 = sphi 0, %s22
      %s39 = sphi 0, %s23
      %s43 = sphi 0, %s43
      %s45 = sphi 0, %s43
      %s46 = sphi 0, %s45
      %s60 = sphi 0, %s46
      %s66 = sphi 0, %s68
      %s69 = sphi 0, %s66
      %s70 = sphi 0, %s69
      %s86 = sphi 0, %s70
    $region4: #{q_head_forward.1} parent=1 // loop_header_branch
      %12 = sbr.rel (%p10) target = $region8
    $region5: #{q_head_forward.1} parent=1 // loop_body
      %s14 = ssub.s32 %s9, 1
      %s15 = ssub.s32 %s9, 2
      %s16 = sadd.s32 %s9, 1
      %s17 = ssub.s32 %s9, %s16
      %p18 = scmp.eq.s32.totalorder %s17, 0
      %s20 = sadd.s32 %s19, 1
      %s21 = scalar_select %p18, %s19, %s20
      %p24 = pneg %p18
      %p25 = scmp.eq.s32.totalorder %s9, 1
      %p26 = por %p24, %p25
      %p27 = scmp.ne.s32.totalorder %s19, %s22
      %p28 = scmp.eq.s32.totalorder %s9, 0
      %p29 = por %p27, %p28
      %p30 = scmp.ne.s32.totalorder %s19, %s22
      %p31 = scmp.eq.s32.totalorder %s14, 1
      %p32 = por %p30, %p31
      %p33 = scmp.ne.s32.totalorder %s22, %s23
      %p34 = scmp.eq.s32.totalorder %s14, 0
      %p35 = por %p33, %p34
      %p36 = scmp.ne.s32.totalorder %s22, %s23
      %p37 = scmp.eq.s32.totalorder %s15, 1
      %p38 = por %p36, %p37
      %p40 = scmp.ne.s32.totalorder %s23, %s39
      %p41 = scmp.eq.s32.totalorder %s15, 0
      %p42 = por %p40, %p41
      %s44 = sadd.s32 %s43, 1
      %p47 = scmp.eq.s32.totalorder %s9, 1
      %p48 = scmp.ne.s32.totalorder %s43, %s45
      %p49 = scmp.eq.s32.totalorder %s9, 0
      %p50 = por %p48, %p49
      %p51 = scmp.ne.s32.totalorder %s43, %s45
      %p52 = scmp.eq.s32.totalorder %s14, 1
      %p53 = por %p51, %p52
      %p54 = scmp.ne.s32.totalorder %s45, %s46
      %p55 = scmp.eq.s32.totalorder %s14, 0
      %p56 = por %p54, %p55
      %p57 = scmp.ne.s32.totalorder %s45, %s46
      %p58 = scmp.eq.s32.totalorder %s15, 1
      %p59 = por %p57, %p58
      %p61 = scmp.ne.s32.totalorder %s46, %s60
      %p62 = scmp.eq.s32.totalorder %s15, 0
      %p63 = por %p61, %p62
      %s64 = ssub.s32 %s9, %s16
      %p65 = scmp.eq.s32.totalorder %s64, 0
      %s67 = sadd.s32 %s66, 1
      %s68 = scalar_select %p65, %s66, %s67
      %p71 = pneg %p65
      %p72 = scmp.eq.s32.totalorder %s9, 1
      %p73 = por %p71, %p72
      %p74 = scmp.ne.s32.totalorder %s66, %s69
      %p75 = scmp.eq.s32.totalorder %s9, 0
      %p76 = por %p74, %p75
      %p77 = scmp.ne.s32.totalorder %s66, %s69
      %p78 = scmp.eq.s32.totalorder %s14, 1
      %p79 = por %p77, %p78
      %p80 = scmp.ne.s32.totalorder %s69, %s70
      %p81 = scmp.eq.s32.totalorder %s14, 0
      %p82 = por %p80, %p81
      %p83 = scmp.ne.s32.totalorder %s69, %s70
      %p84 = scmp.eq.s32.totalorder %s15, 1
      %p85 = por %p83, %p84
      %p87 = scmp.ne.s32.totalorder %s70, %s86
      %p88 = scmp.eq.s32.totalorder %s15, 0
      %p89 = por %p87, %p88
      %p90 = scmp.le.s32.totalorder 1, %s9
      %p91 = scmp.lt.s32.totalorder %s9, 3
      %p92 = pnand %p90, %p91
      %p93 = pneg %p92
      // Predicated region
      $region9: #{q_head_forward.1} parent=5 // pred_check
        _
      $region10: #{q_head_forward.1} parent=5 // pred_check_branch
        %95 = sbr.rel (%p92) target = $region12
      $region11: #{q_head_forward.1} parent=5 // pred_region
        %s96 = ssub.s32 %s9, 1
        // Predicated region
        $region13: #{q_head_forward.1} parent=11 // pred_check
          %p97 = pneg %p56
        $region14: #{q_head_forward.1} parent=11 // pred_check_branch
          %99 = sbr.rel (%p97) target = $region16
        $region15: #{q_head_forward.1} parent=11 // pred_region
          %s101 = ssub.s32 20480, 20480
          %102 = vsyncadd [#allocation3], %s101
          %s103 = sshll.u32 [#allocation2], 4
          %s104 = int_to_ptr.vmem [resolvable:$true] %s103
          %109 = dma.hbm_to_vmem [thread:$0]  %s1, 20480, %s104, [#allocation3], 128, 128, 8
        $region16: #{q_head_forward.1} parent=11 // pred_fallthru
          _
      $region12: #{q_head_forward.1} parent=5 // pred_fallthru
        _
      %p110 = scmp.lt.s32.totalorder %s9, 2
      // Predicated region
      $region17: #{q_head_forward.1} parent=5 // pred_check
        %p111 = pneg %p110
      $region18: #{q_head_forward.1} parent=5 // pred_check_branch
        %113 = sbr.rel (%p111) target = $region20
      $region19: #{q_head_forward.1} parent=5 // pred_region
        // Predicated region
        $region21: #{q_head_forward.1} parent=19 // pred_check
          %p114 = pneg %p29
        $region22: #{q_head_forward.1} parent=19 // pred_check_branch
          %116 = sbr.rel (%p114) target = $region24
        $region23: #{q_head_forward.1} parent=19 // pred_region
          %s117 = smul.u32 3, %s9
          %p118 = scmp.lt.s32.totalorder %s117, 5
          %s119 = scalar_select %p118, %s117, 5
          %s120 = smul.addr %s119, 8
          %s121 = scalar_lea.vmem %s0, %s120
          %s122 = smul.u32 3, %s9
        $region24: #{q_head_forward.1} parent=19 // pred_fallthru
          _
      $region20: #{q_head_forward.1} parent=5 // pred_fallthru
        _
      %p123 = scmp.le.s32.totalorder 1, %s9
      %p124 = scmp.lt.s32.totalorder %s9, 3
      %p125 = pnand %p123, %p124
      %p126 = pneg %p125
      // Predicated region
      $region25: #{q_head_forward.1} parent=5 // pred_check
        _
      $region26: #{q_head_forward.1} parent=5 // pred_check_branch
        %128 = sbr.rel (%p125) target = $region28
      $region27: #{q_head_forward.1} parent=5 // pred_region
        %s129 = ssub.s32 %s9, 1
        // Predicated region
        $region29: #{q_head_forward.1} parent=27 // pred_check
          %p130 = pneg %p56
        $region30: #{q_head_forward.1} parent=27 // pred_check_branch
          %132 = sbr.rel (%p130) target = $region32
        $region31: #{q_head_forward.1} parent=27 // pred_region
          %133 = dma.done [#allocation3], 20480
        $region32: #{q_head_forward.1} parent=27 // pred_fallthru
          _
        %s134 = smul.u32 3, %s14
        %p135 = scmp.lt.s32.totalorder %s134, 5
        %s136 = scalar_select %p135, %s134, 5
        %s137 = smul.addr %s136, 8
        %s138 = scalar_lea.vmem %s0, %s137
        %p139 = pneg %p35
        %p140 = pneg %p32
        %p141 = pneg %p56
        %p142 = pneg %p53
        %p143 = pneg %p82
        %p144 = pneg %p79
        %s145 = smul.u32 3, %s14
        %p146 = scmp.lt.s32.totalorder %s145, 5
        %s147 = scalar_select %p146, %s145, 5
        %s148 = smul.addr %s147, 8
        %s149 = scalar_lea.vmem %s2, %s148
        %s150 = smul.u32 3, %s14
        %p151 = scmp.lt.s32.totalorder %s150, 5
        %s152 = scalar_select %p151, %s150, 5
        %s153 = smul.addr %s152, 8
        %s154 = scalar_lea.vmem %s0, %s153
        %s155 = smul.u32 3, %s14
        %s156 = smul.u32 3, %s14
        %p157 = scmp.lt.s32.totalorder %s156, 5
        %s158 = scalar_select %p157, %s156, 5
        %s159 = smul.addr %s158, 8
        %s160 = scalar_lea.vmem %s2, %s159
        %s161 = smul.u32 3, %s14
        %v162 = vld [vmem:[%s154] sm:$0xff]
        %v163 = vld [vmem:[%s154 + $0x8] sm:$0xff]
        %v164 = vld [vmem:[%s154 + $0x10] sm:$0xff]
        %v165 = vmul.f32 %v162, %v162
        %v166 = vmul.f32 %v163, %v163
        %v167 = vmul.f32 %v164, %v164
        %v168 = vsub.f32 %v162, 0.33
        %v169 = vsub.f32 %v163, 0.33
        %v170 = vsub.f32 %v164, 0.33
        %v171 = vmax.f32 %v168, 0.0
        %v172 = vmax.f32 %v169, 0.0
        %v173 = vmax.f32 %v170, 0.0
        %v174 = vmul.f32 %v171, %v171
        %v175 = vmul.f32 %v172, %v172
        %v176 = vmul.f32 %v173, %v173
        %v177 = vsub.f32 %v162, 0.66
        %v178 = vsub.f32 %v163, 0.66
        %v179 = vsub.f32 %v164, 0.66
        %v180 = vmax.f32 %v177, 0.0
        %v181 = vmax.f32 %v178, 0.0
        %v182 = vmax.f32 %v179, 0.0
        %v183 = vmul.f32 %v180, %v180
        %v184 = vmul.f32 %v181, %v181
        %v185 = vmul.f32 %v182, %v182
        %v186 = vld [vmem:[#allocation2] sm:$0xff]
        %v187 = vld [vmem:[#allocation2 + $0x8] sm:$0xff]
        %v188 = vld [vmem:[#allocation2 + $0x10] sm:$0xff]
        %v189 = vld [vmem:[#allocation2 + $0x18] sm:$0xff]
        %v190 = vld [vmem:[#allocation2 + $0x20] sm:$0xff]
        %v191 = vld [vmem:[#allocation2 + $0x28] sm:$0xff]
        %v192 = vld [vmem:[#allocation2 + $0x30] sm:$0xff]
        %v193 = vld [vmem:[#allocation2 + $0x38] sm:$0xff]
        %v194 = vld [vmem:[#allocation2 + $0x40] sm:$0xff]
        %v195 = vld [vmem:[#allocation2 + $0x48] sm:$0xff]
        %v196 = vld [vmem:[#allocation2 + $0x50] sm:$0xff]
        %v197 = vld [vmem:[#allocation2 + $0x58] sm:$0xff]
        %v198 = vld [vmem:[#allocation2 + $0x60] sm:$0xff]
        %v199 = vld [vmem:[#allocation2 + $0x68] sm:$0xff]
        %v200 = vld [vmem:[#allocation2 + $0x70] sm:$0xff]
        %v201 = vld [vmem:[#allocation2 + $0x78] sm:$0xff]
        %203 = vset.pattern.permute.xlu0 0
        %204 = vperm.xlu0 %203, %v162
        %v205 = vpop.permute.xlu0 %204
        %208 = vset.pattern.permute.xlu0 0
        %209 = vperm.xlu0 %208, %v163
        %v210 = vpop.permute.xlu0 %209
        %213 = vset.pattern.permute.xlu0 0
        %214 = vperm.xlu0 %213, %v164
        %v215 = vpop.permute.xlu0 %214
        %v217 = vmul.f32 %v205, %v162
        %v218 = vmul.f32 %v210, %v163
        %v219 = vmul.f32 %v215, %v164
        %s220 = scalar_lea.vmem [#allocation2], 128
        %v221 = vld [vmem:[%s220] sm:$0xff]
        %v222 = vld [vmem:[%s220 + $0x8] sm:$0xff]
        %v223 = vld [vmem:[%s220 + $0x10] sm:$0xff]
        %v224 = vld [vmem:[%s220 + $0x18] sm:$0xff]
        %v225 = vld [vmem:[%s220 + $0x20] sm:$0xff]
        %v226 = vld [vmem:[%s220 + $0x28] sm:$0xff]
        %v227 = vld [vmem:[%s220 + $0x30] sm:$0xff]
        %v228 = vld [vmem:[%s220 + $0x38] sm:$0xff]
        %v229 = vld [vmem:[%s220 + $0x40] sm:$0xff]
        %v230 = vld [vmem:[%s220 + $0x48] sm:$0xff]
        %v231 = vld [vmem:[%s220 + $0x50] sm:$0xff]
        %v232 = vld [vmem:[%s220 + $0x58] sm:$0xff]
        %v233 = vld [vmem:[%s220 + $0x60] sm:$0xff]
        %v234 = vld [vmem:[%s220 + $0x68] sm:$0xff]
        %v235 = vld [vmem:[%s220 + $0x70] sm:$0xff]
        %v236 = vld [vmem:[%s220 + $0x78] sm:$0xff]
        %237 = vmatprep.subr.mxu0 0.0
        %238 = vmatpush1.msra.mxu0 %v221
        %239 = vmatprep.subr.mxu0 0.0
        %240 = vmatpush1.msra.mxu0 %v222
        %241 = vmatprep.subr.mxu0 0.0
        %242 = vmatpush1.msra.mxu0 %v223
        %243 = vmatprep.subr.mxu0 0.0
        %244 = vmatpush1.msra.mxu0 %v224
        %245 = vmatprep.subr.mxu0 0.0
        %246 = vmatpush1.msra.mxu0 %v225
        %247 = vmatprep.subr.mxu0 0.0
        %248 = vmatpush1.msra.mxu0 %v226
        %249 = vmatprep.subr.mxu0 0.0
        %250 = vmatpush1.msra.mxu0 %v227
        %251 = vmatprep.subr.mxu0 0.0
        %252 = vmatpush1.msra.mxu0 %v228
        %253 = vmatprep.subr.mxu0 0.0
        %254 = vmatpush1.msra.mxu0 %v229
        %255 = vmatprep.subr.mxu0 0.0
        %256 = vmatpush1.msra.mxu0 %v230
        %257 = vmatprep.subr.mxu0 0.0
        %258 = vmatpush1.msra.mxu0 %v231
        %259 = vmatprep.subr.mxu0 0.0
        %260 = vmatpush1.msra.mxu0 %v232
        %261 = vmatprep.subr.mxu0 0.0
        %262 = vmatpush1.msra.mxu0 %v233
        %263 = vmatprep.subr.mxu0 0.0
        %264 = vmatpush1.msra.mxu0 %v234
        %265 = vmatprep.subr.mxu0 0.0
        %266 = vmatpush1.msra.mxu0 %v235
        %267 = vmatprep.subr.mxu0 0.0
        %268 = vmatpush1.msra.mxu0 %v236
        %269 = vmatprep.subr.mxu0 0.0
        %270 = vmatpush1.msra.mxu0 0.0
        %271 = vmatprep.subr.mxu0 0.0
        %272 = vmatpush1.msra.mxu0 0.0
        %273 = vmatprep.subr.mxu0 0.0
        %274 = vmatpush1.msra.mxu0 0.0
        %275 = vmatprep.subr.mxu0 0.0
        %276 = vmatpush1.msra.mxu0 0.0
        %277 = vmatprep.subr.mxu0 0.0
        %278 = vmatpush1.msra.mxu0 0.0
        %279 = vmatprep.subr.mxu0 0.0
        %280 = vmatpush1.msra.mxu0 0.0
        %281 = vmatprep.subr.mxu0 0.0
        %282 = vmatpush1.msra.mxu0 0.0
        %283 = vmatprep.subr.mxu0 0.0
        %284 = vmatpush1.msra.mxu0 0.0
        %285 = vmatprep.subr.mxu0 0.0
        %286 = vmatpush1.msra.mxu0 0.0
        %287 = vmatprep.subr.mxu0 0.0
        %288 = vmatpush1.msra.mxu0 0.0
        %289 = vmatprep.subr.mxu0 0.0
        %290 = vmatpush1.msra.mxu0 0.0
        %291 = vmatprep.subr.mxu0 0.0
        %292 = vmatpush1.msra.mxu0 0.0
        %293 = vmatprep.subr.mxu0 0.0
        %294 = vmatpush1.msra.mxu0 0.0
        %295 = vmatprep.subr.mxu0 0.0
        %296 = vmatpush1.msra.mxu0 0.0
        %297 = vmatprep.subr.mxu0 0.0
        %298 = vmatpush1.msra.mxu0 0.0
        %299 = vmatprep.subr.mxu0 0.0
        %300 = vmatpush1.msra.mxu0 0.0
        %301 = vmatprep.mubr.f32.mxu0 0.0
        %302 = vmatmul.mubr.f32.gmra.mrb[0].mxu0 %v217
        %v303 = vpop.f32.mrb[0].mxu0
        %v304 = vadd.f32 0.0, %v303
        %v305 = vpop.f32.mrb[0].mxu0
        %306 = vmatprep.mubr.f32.mxu0 0.0
        %307 = vmatmul.mubr.f32.gmra.mrb[0].mxu0 %v218
        %v308 = vpop.f32.mrb[0].mxu0
        %v309 = vadd.f32 0.0, %v308
        %v310 = vpop.f32.mrb[0].mxu0
        %311 = vmatprep.mubr.f32.mxu0 0.0
        %312 = vmatmul.mubr.f32.gmra.mrb[0].mxu0 %v219
        %v313 = vpop.f32.mrb[0].mxu0
        %v314 = vadd.f32 0.0, %v313
        %v315 = vpop.f32.mrb[0].mxu0
        %316 = vdwg.mxu0
        %317 = vmatprep.subr.mxu0 0.0
        %318 = vmatpush1.msra.mxu0 %v186
        %319 = vmatprep.subr.mxu0 0.0
        %320 = vmatpush1.msra.mxu0 %v187
        %321 = vmatprep.subr.mxu0 0.0
        %322 = vmatpush1.msra.mxu0 %v188
        %323 = vmatprep.subr.mxu0 0.0
        %324 = vmatpush1.msra.mxu0 %v189
        %325 = vmatprep.subr.mxu0 0.0
        %326 = vmatpush1.msra.mxu0 %v190
        %327 = vmatprep.subr.mxu0 0.0
        %328 = vmatpush1.msra.mxu0 %v191
        %329 = vmatprep.subr.mxu0 0.0
        %330 = vmatpush1.msra.mxu0 %v192
        %331 = vmatprep.subr.mxu0 0.0
        %332 = vmatpush1.msra.mxu0 %v193
        %333 = vmatprep.subr.mxu0 0.0
        %334 = vmatpush1.msra.mxu0 %v194
        %335 = vmatprep.subr.mxu0 0.0
        %336 = vmatpush1.msra.mxu0 %v195
        %337 = vmatprep.subr.mxu0 0.0
        %338 = vmatpush1.msra.mxu0 %v196
        %339 = vmatprep.subr.mxu0 0.0
        %340 = vmatpush1.msra.mxu0 %v197
        %341 = vmatprep.subr.mxu0 0.0
        %342 = vmatpush1.msra.mxu0 %v198
        %343 = vmatprep.subr.mxu0 0.0
        %344 = vmatpush1.msra.mxu0 %v199
        %345 = vmatprep.subr.mxu0 0.0
        %346 = vmatpush1.msra.mxu0 %v200
        %347 = vmatprep.subr.mxu0 0.0
        %348 = vmatpush1.msra.mxu0 %v201
        %349 = vmatprep.subr.mxu0 0.0
        %350 = vmatpush1.msra.mxu0 0.0
        %351 = vmatprep.subr.mxu0 0.0
        %352 = vmatpush1.msra.mxu0 0.0
        %353 = vmatprep.subr.mxu0 0.0
        %354 = vmatpush1.msra.mxu0 0.0
        %355 = vmatprep.subr.mxu0 0.0
        %356 = vmatpush1.msra.mxu0 0.0
        %357 = vmatprep.subr.mxu0 0.0
        %358 = vmatpush1.msra.mxu0 0.0
        %359 = vmatprep.subr.mxu0 0.0
        %360 = vmatpush1.msra.mxu0 0.0
        %361 = vmatprep.subr.mxu0 0.0
        %362 = vmatpush1.msra.mxu0 0.0
        %363 = vmatprep.subr.mxu0 0.0
        %364 = vmatpush1.msra.mxu0 0.0
        %365 = vmatprep.subr.mxu0 0.0
        %366 = vmatpush1.msra.mxu0 0.0
        %367 = vmatprep.subr.mxu0 0.0
        %368 = vmatpush1.msra.mxu0 0.0
        %369 = vmatprep.subr.mxu0 0.0
        %370 = vmatpush1.msra.mxu0 0.0
        %371 = vmatprep.subr.mxu0 0.0
        %372 = vmatpush1.msra.mxu0 0.0
        %373 = vmatprep.subr.mxu0 0.0
        %374 = vmatpush1.msra.mxu0 0.0
        %375 = vmatprep.subr.mxu0 0.0
        %376 = vmatpush1.msra.mxu0 0.0
        %377 = vmatprep.subr.mxu0 0.0
        %378 = vmatpush1.msra.mxu0 0.0
        %379 = vmatprep.subr.mxu0 0.0
        %380 = vmatpush1.msra.mxu0 0.0
        %381 = vmatprep.mubr.f32.mxu0 0.0
        %382 = vmatmul.mubr.f32.gmra.mrb[0].mxu0 %v162
        %v383 = vpop.f32.mrb[0].mxu0
        %v384 = vadd.f32 %v304, %v383
        %v385 = vpop.f32.mrb[0].mxu0
        %386 = vmatprep.mubr.f32.mxu0 0.0
        %387 = vmatmul.mubr.f32.gmra.mrb[0].mxu0 %v163
        %v388 = vpop.f32.mrb[0].mxu0
        %v389 = vadd.f32 %v309, %v388
        %v390 = vpop.f32.mrb[0].mxu0
        %391 = vmatprep.mubr.f32.mxu0 0.0
        %392 = vmatmul.mubr.f32.gmra.mrb[0].mxu0 %v164
        %v393 = vpop.f32.mrb[0].mxu0
        %v394 = vadd.f32 %v314, %v393
        %v395 = vpop.f32.mrb[0].mxu0
        %396 = vdwg.mxu0
        %398 = vset.pattern.permute.xlu0 0
        %399 = vperm.xlu0 %398, %v165
        %v400 = vpop.permute.xlu0 %399
        %403 = vset.pattern.permute.xlu0 0
        %404 = vperm.xlu0 %403, %v166
        %v405 = vpop.permute.xlu0 %404
        %408 = vset.pattern.permute.xlu0 0
        %409 = vperm.xlu0 %408, %v167
        %v410 = vpop.permute.xlu0 %409
        %v412 = vmul.f32 %v400, %v162
        %v413 = vmul.f32 %v405, %v163
        %v414 = vmul.f32 %v410, %v164
        %s415 = scalar_lea.vmem [#allocation2], 256
        %v416 = vld [vmem:[%s415] sm:$0xff]
        %v417 = vld [vmem:[%s415 + $0x8] sm:$0xff]
        %v418 = vld [vmem:[%s415 + $0x10] sm:$0xff]
        %v419 = vld [vmem:[%s415 + $0x18] sm:$0xff]
        %v420 = vld [vmem:[%s415 + $0x20] sm:$0xff]
        %v421 = vld [vmem:[%s415 + $0x28] sm:$0xff]
        %v422 = vld [vmem:[%s415 + $0x30] sm:$0xff]
        %v423 = vld [vmem:[%s415 + $0x38] sm:$0xff]
        %v424 = vld [vmem:[%s415 + $0x40] sm:$0xff]
        %v425 = vld [vmem:[%s415 + $0x48] sm:$0xff]
        %v426 = vld [vmem:[%s415 + $0x50] sm:$0xff]
        %v427 = vld [vmem:[%s415 + $0x58] sm:$0xff]
        %v428 = vld [vmem:[%s415 + $0x60] sm:$0xff]
        %v429 = vld [vmem:[%s415 + $0x68] sm:$0xff]
        %v430 = vld [vmem:[%s415 + $0x70] sm:$0xff]
        %v431 = vld [vmem:[%s415 + $0x78] sm:$0xff]
        %432 = vmatprep.subr.mxu0 0.0
        %433 = vmatpush1.msra.mxu0 %v416
        %434 = vmatprep.subr.mxu0 0.0
        %435 = vmatpush1.msra.mxu0 %v417
        %436 = vmatprep.subr.mxu0 0.0
        %437 = vmatpush1.msra.mxu0 %v418
        %438 = vmatprep.subr.mxu0 0.0
        %439 = vmatpush1.msra.mxu0 %v419
        %440 = vmatprep.subr.mxu0 0.0
        %441 = vmatpush1.msra.mxu0 %v420
        %442 = vmatprep.subr.mxu0 0.0
        %443 = vmatpush1.msra.mxu0 %v421
        %444 = vmatprep.subr.mxu0 0.0
        %445 = vmatpush1.msra.mxu0 %v422
        %446 = vmatprep.subr.mxu0 0.0
        %447 = vmatpush1.msra.mxu0 %v423
        %448 = vmatprep.subr.mxu0 0.0
        %449 = vmatpush1.msra.mxu0 %v424
        %450 = vmatprep.subr.mxu0 0.0
        %451 = vmatpush1.msra.mxu0 %v425
        %452 = vmatprep.subr.mxu0 0.0
        %453 = vmatpush1.msra.mxu0 %v426
        %454 = vmatprep.subr.mxu0 0.0
        %455 = vmatpush1.msra.mxu0 %v427
        %456 = vmatprep.subr.mxu0 0.0
        %457 = vmatpush1.msra.mxu0 %v428
        %458 = vmatprep.subr.mxu0 0.0
        %459 = vmatpush1.msra.mxu0 %v429
        %460 = vmatprep.subr.mxu0 0.0
        %461 = vmatpush1.msra.mxu0 %v430
        %462 = vmatprep.subr.mxu0 0.0
        %463 = vmatpush1.msra.mxu0 %v431
        %464 = vmatprep.subr.mxu0 0.0
        %465 = vmatpush1.msra.mxu0 0.0
        %466 = vmatprep.subr.mxu0 0.0
        %467 = vmatpush1.msra.mxu0 0.0
        %468 = vmatprep.subr.mxu0 0.0
        %469 = vmatpush1.msra.mxu0 0.0
        %470 = vmatprep.subr.mxu0 0.0
        %471 = vmatpush1.msra.mxu0 0.0
        %472 = vmatprep.subr.mxu0 0.0
        %473 = vmatpush1.msra.mxu0 0.0
        %474 = vmatprep.subr.mxu0 0.0
        %475 = vmatpush1.msra.mxu0 0.0
        %476 = vmatprep.subr.mxu0 0.0
        %477 = vmatpush1.msra.mxu0 0.0
        %478 = vmatprep.subr.mxu0 0.0
        %479 = vmatpush1.msra.mxu0 0.0
        %480 = vmatprep.subr.mxu0 0.0
        %481 = vmatpush1.msra.mxu0 0.0
        %482 = vmatprep.subr.mxu0 0.0
        %483 = vmatpush1.msra.mxu0 0.0
        %484 = vmatprep.subr.mxu0 0.0
        %485 = vmatpush1.msra.mxu0 0.0
        %486 = vmatprep.subr.mxu0 0.0
        %487 = vmatpush1.msra.mxu0 0.0
        %488 = vmatprep.subr.mxu0 0.0
        %489 = vmatpush1.msra.mxu0 0.0
        %490 = vmatprep.subr.mxu0 0.0
        %491 = vmatpush1.msra.mxu0 0.0
        %492 = vmatprep.subr.mxu0 0.0
        %493 = vmatpush1.msra.mxu0 0.0
        %494 = vmatprep.subr.mxu0 0.0
        %495 = vmatpush1.msra.mxu0 0.0
        %496 = vmatprep.mubr.f32.mxu0 0.0
        %497 = vmatmul.mubr.f32.gmra.mrb[0].mxu0 %v412
        %v498 = vpop.f32.mrb[0].mxu0
        %v499 = vadd.f32 0.0, %v498
        %v500 = vpop.f32.mrb[0].mxu0
        %501 = vmatprep.mubr.f32.mxu0 0.0
        %502 = vmatmul.mubr.f32.gmra.mrb[0].mxu0 %v413
        %v503 = vpop.f32.mrb[0].mxu0
        %v504 = vadd.f32 0.0, %v503
        %v505 = vpop.f32.mrb[0].mxu0
        %506 = vmatprep.mubr.f32.mxu0 0.0
        %507 = vmatmul.mubr.f32.gmra.mrb[0].mxu0 %v414
        %v508 = vpop.f32.mrb[0].mxu0
        %v509 = vadd.f32 0.0, %v508
        %v510 = vpop.f32.mrb[0].mxu0
        %511 = vdwg.mxu0
        %v512 = vadd.f32 %v384, %v499
        %v513 = vadd.f32 %v389, %v504
        %v514 = vadd.f32 %v394, %v509
        %516 = vset.pattern.permute.xlu0 0
        %517 = vperm.xlu0 %516, %v174
        %v518 = vpop.permute.xlu0 %517
        %521 = vset.pattern.permute.xlu0 0
        %522 = vperm.xlu0 %521, %v175
        %v523 = vpop.permute.xlu0 %522
        %526 = vset.pattern.permute.xlu0 0
        %527 = vperm.xlu0 %526, %v176
        %v528 = vpop.permute.xlu0 %527
        %v530 = vmul.f32 %v518, %v162
        %v531 = vmul.f32 %v523, %v163
        %v532 = vmul.f32 %v528, %v164
        %s533 = scalar_lea.vmem [#allocation2], 384
        %v534 = vld [vmem:[%s533] sm:$0xff]
        %v535 = vld [vmem:[%s533 + $0x8] sm:$0xff]
        %v536 = vld [vmem:[%s533 + $0x10] sm:$0xff]
        %v537 = vld [vmem:[%s533 + $0x18] sm:$0xff]
        %v538 = vld [vmem:[%s533 + $0x20] sm:$0xff]
        %v539 = vld [vmem:[%s533 + $0x28] sm:$0xff]
        %v540 = vld [vmem:[%s533 + $0x30] sm:$0xff]
        %v541 = vld [vmem:[%s533 + $0x38] sm:$0xff]
        %v542 = vld [vmem:[%s533 + $0x40] sm:$0xff]
        %v543 = vld [vmem:[%s533 + $0x48] sm:$0xff]
        %v544 = vld [vmem:[%s533 + $0x50] sm:$0xff]
        %v545 = vld [vmem:[%s533 + $0x58] sm:$0xff]
        %v546 = vld [vmem:[%s533 + $0x60] sm:$0xff]
        %v547 = vld [vmem:[%s533 + $0x68] sm:$0xff]
        %v548 = vld [vmem:[%s533 + $0x70] sm:$0xff]
        %v549 = vld [vmem:[%s533 + $0x78] sm:$0xff]
        %550 = vmatprep.subr.mxu0 0.0
        %551 = vmatpush1.msra.mxu0 %v534
        %552 = vmatprep.subr.mxu0 0.0
        %553 = vmatpush1.msra.mxu0 %v535
        %554 = vmatprep.subr.mxu0 0.0
        %555 = vmatpush1.msra.mxu0 %v536
        %556 = vmatprep.subr.mxu0 0.0
        %557 = vmatpush1.msra.mxu0 %v537
        %558 = vmatprep.subr.mxu0 0.0
        %559 = vmatpush1.msra.mxu0 %v538
        %560 = vmatprep.subr.mxu0 0.0
        %561 = vmatpush1.msra.mxu0 %v539
        %562 = vmatprep.subr.mxu0 0.0
        %563 = vmatpush1.msra.mxu0 %v540
        %564 = vmatprep.subr.mxu0 0.0
        %565 = vmatpush1.msra.mxu0 %v541
        %566 = vmatprep.subr.mxu0 0.0
        %567 = vmatpush1.msra.mxu0 %v542
        %568 = vmatprep.subr.mxu0 0.0
        %569 = vmatpush1.msra.mxu0 %v543
        %570 = vmatprep.subr.mxu0 0.0
        %571 = vmatpush1.msra.mxu0 %v544
        %572 = vmatprep.subr.mxu0 0.0
        %573 = vmatpush1.msra.mxu0 %v545
        %574 = vmatprep.subr.mxu0 0.0
        %575 = vmatpush1.msra.mxu0 %v546
        %576 = vmatprep.subr.mxu0 0.0
        %577 = vmatpush1.msra.mxu0 %v547
        %578 = vmatprep.subr.mxu0 0.0
        %579 = vmatpush1.msra.mxu0 %v548
        %580 = vmatprep.subr.mxu0 0.0
        %581 = vmatpush1.msra.mxu0 %v549
        %582 = vmatprep.subr.mxu0 0.0
        %583 = vmatpush1.msra.mxu0 0.0
        %584 = vmatprep.subr.mxu0 0.0
        %585 = vmatpush1.msra.mxu0 0.0
        %586 = vmatprep.subr.mxu0 0.0
        %587 = vmatpush1.msra.mxu0 0.0
        %588 = vmatprep.subr.mxu0 0.0
        %589 = vmatpush1.msra.mxu0 0.0
        %590 = vmatprep.subr.mxu0 0.0
        %591 = vmatpush1.msra.mxu0 0.0
        %592 = vmatprep.subr.mxu0 0.0
        %593 = vmatpush1.msra.mxu0 0.0
        %594 = vmatprep.subr.mxu0 0.0
        %595 = vmatpush1.msra.mxu0 0.0
        %596 = vmatprep.subr.mxu0 0.0
        %597 = vmatpush1.msra.mxu0 0.0
        %598 = vmatprep.subr.mxu0 0.0
        %599 = vmatpush1.msra.mxu0 0.0
        %600 = vmatprep.subr.mxu0 0.0
        %601 = vmatpush1.msra.mxu0 0.0
        %602 = vmatprep.subr.mxu0 0.0
        %603 = vmatpush1.msra.mxu0 0.0
        %604 = vmatprep.subr.mxu0 0.0
        %605 = vmatpush1.msra.mxu0 0.0
        %606 = vmatprep.subr.mxu0 0.0
        %607 = vmatpush1.msra.mxu0 0.0
        %608 = vmatprep.subr.mxu0 0.0
        %609 = vmatpush1.msra.mxu0 0.0
        %610 = vmatprep.subr.mxu0 0.0
        %611 = vmatpush1.msra.mxu0 0.0
        %612 = vmatprep.subr.mxu0 0.0
        %613 = vmatpush1.msra.mxu0 0.0
        %614 = vmatprep.mubr.f32.mxu0 0.0
        %615 = vmatmul.mubr.f32.gmra.mrb[0].mxu0 %v530
        %v616 = vpop.f32.mrb[0].mxu0
        %v617 = vadd.f32 0.0, %v616
        %v618 = vpop.f32.mrb[0].mxu0
        %619 = vmatprep.mubr.f32.mxu0 0.0
        %620 = vmatmul.mubr.f32.gmra.mrb[0].mxu0 %v531
        %v621 = vpop.f32.mrb[0].mxu0
        %v622 = vadd.f32 0.0, %v621
        %v623 = vpop.f32.mrb[0].mxu0
        %624 = vmatprep.mubr.f32.mxu0 0.0
        %625 = vmatmul.mubr.f32.gmra.mrb[0].mxu0 %v532
        %v626 = vpop.f32.mrb[0].mxu0
        %v627 = vadd.f32 0.0, %v626
        %v628 = vpop.f32.mrb[0].mxu0
        %629 = vdwg.mxu0
        %v630 = vadd.f32 %v512, %v617
        %v631 = vadd.f32 %v513, %v622
        %v632 = vadd.f32 %v514, %v627
        %634 = vset.pattern.permute.xlu0 0
        %635 = vperm.xlu0 %634, %v183
        %v636 = vpop.permute.xlu0 %635
        %639 = vset.pattern.permute.xlu0 0
        %640 = vperm.xlu0 %639, %v184
        %v641 = vpop.permute.xlu0 %640
        %644 = vset.pattern.permute.xlu0 0
        %645 = vperm.xlu0 %644, %v185
        %v646 = vpop.permute.xlu0 %645
        %v648 = vmul.f32 %v636, %v162
        %v649 = vmul.f32 %v641, %v163
        %v650 = vmul.f32 %v646, %v164
        %s651 = scalar_lea.vmem [#allocation2], 512
        %v652 = vld [vmem:[%s651] sm:$0xff]
        %v653 = vld [vmem:[%s651 + $0x8] sm:$0xff]
        %v654 = vld [vmem:[%s651 + $0x10] sm:$0xff]
        %v655 = vld [vmem:[%s651 + $0x18] sm:$0xff]
        %v656 = vld [vmem:[%s651 + $0x20] sm:$0xff]
        %v657 = vld [vmem:[%s651 + $0x28] sm:$0xff]
        %v658 = vld [vmem:[%s651 + $0x30] sm:$0xff]
        %v659 = vld [vmem:[%s651 + $0x38] sm:$0xff]
        %v660 = vld [vmem:[%s651 + $0x40] sm:$0xff]
        %v661 = vld [vmem:[%s651 + $0x48] sm:$0xff]
        %v662 = vld [vmem:[%s651 + $0x50] sm:$0xff]
        %v663 = vld [vmem:[%s651 + $0x58] sm:$0xff]
        %v664 = vld [vmem:[%s651 + $0x60] sm:$0xff]
        %v665 = vld [vmem:[%s651 + $0x68] sm:$0xff]
        %v666 = vld [vmem:[%s651 + $0x70] sm:$0xff]
        %v667 = vld [vmem:[%s651 + $0x78] sm:$0xff]
        %668 = vmatprep.subr.mxu0 0.0
        %669 = vmatpush1.msra.mxu0 %v652
        %670 = vmatprep.subr.mxu0 0.0
        %671 = vmatpush1.msra.mxu0 %v653
        %672 = vmatprep.subr.mxu0 0.0
        %673 = vmatpush1.msra.mxu0 %v654
        %674 = vmatprep.subr.mxu0 0.0
        %675 = vmatpush1.msra.mxu0 %v655
        %676 = vmatprep.subr.mxu0 0.0
        %677 = vmatpush1.msra.mxu0 %v656
        %678 = vmatprep.subr.mxu0 0.0
        %679 = vmatpush1.msra.mxu0 %v657
        %680 = vmatprep.subr.mxu0 0.0
        %681 = vmatpush1.msra.mxu0 %v658
        %682 = vmatprep.subr.mxu0 0.0
        %683 = vmatpush1.msra.mxu0 %v659
        %684 = vmatprep.subr.mxu0 0.0
        %685 = vmatpush1.msra.mxu0 %v660
        %686 = vmatprep.subr.mxu0 0.0
        %687 = vmatpush1.msra.mxu0 %v661
        %688 = vmatprep.subr.mxu0 0.0
        %689 = vmatpush1.msra.mxu0 %v662
        %690 = vmatprep.subr.mxu0 0.0
        %691 = vmatpush1.msra.mxu0 %v663
        %692 = vmatprep.subr.mxu0 0.0
        %693 = vmatpush1.msra.mxu0 %v664
        %694 = vmatprep.subr.mxu0 0.0
        %695 = vmatpush1.msra.mxu0 %v665
        %696 = vmatprep.subr.mxu0 0.0
        %697 = vmatpush1.msra.mxu0 %v666
        %698 = vmatprep.subr.mxu0 0.0
        %699 = vmatpush1.msra.mxu0 %v667
        %700 = vmatprep.subr.mxu0 0.0
        %701 = vmatpush1.msra.mxu0 0.0
        %702 = vmatprep.subr.mxu0 0.0
        %703 = vmatpush1.msra.mxu0 0.0
        %704 = vmatprep.subr.mxu0 0.0
        %705 = vmatpush1.msra.mxu0 0.0
        %706 = vmatprep.subr.mxu0 0.0
        %707 = vmatpush1.msra.mxu0 0.0
        %708 = vmatprep.subr.mxu0 0.0
        %709 = vmatpush1.msra.mxu0 0.0
        %710 = vmatprep.subr.mxu0 0.0
        %711 = vmatpush1.msra.mxu0 0.0
        %712 = vmatprep.subr.mxu0 0.0
        %713 = vmatpush1.msra.mxu0 0.0
        %714 = vmatprep.subr.mxu0 0.0
        %715 = vmatpush1.msra.mxu0 0.0
        %716 = vmatprep.subr.mxu0 0.0
        %717 = vmatpush1.msra.mxu0 0.0
        %718 = vmatprep.subr.mxu0 0.0
        %719 = vmatpush1.msra.mxu0 0.0
        %720 = vmatprep.subr.mxu0 0.0
        %721 = vmatpush1.msra.mxu0 0.0
        %722 = vmatprep.subr.mxu0 0.0
        %723 = vmatpush1.msra.mxu0 0.0
        %724 = vmatprep.subr.mxu0 0.0
        %725 = vmatpush1.msra.mxu0 0.0
        %726 = vmatprep.subr.mxu0 0.0
        %727 = vmatpush1.msra.mxu0 0.0
        %728 = vmatprep.subr.mxu0 0.0
        %729 = vmatpush1.msra.mxu0 0.0
        %730 = vmatprep.subr.mxu0 0.0
        %731 = vmatpush1.msra.mxu0 0.0
        %732 = vmatprep.mubr.f32.mxu0 0.0
        %733 = vmatmul.mubr.f32.gmra.mrb[0].mxu0 %v648
        %v734 = vpop.f32.mrb[0].mxu0
        %v735 = vadd.f32 0.0, %v734
        %v736 = vpop.f32.mrb[0].mxu0
        %737 = vmatprep.mubr.f32.mxu0 0.0
        %738 = vmatmul.mubr.f32.gmra.mrb[0].mxu0 %v649
        %v739 = vpop.f32.mrb[0].mxu0
        %v740 = vadd.f32 0.0, %v739
        %v741 = vpop.f32.mrb[0].mxu0
        %742 = vmatprep.mubr.f32.mxu0 0.0
        %743 = vmatmul.mubr.f32.gmra.mrb[0].mxu0 %v650
        %v744 = vpop.f32.mrb[0].mxu0
        %v745 = vadd.f32 0.0, %v744
        %v746 = vpop.f32.mrb[0].mxu0
        %747 = vdwg.mxu0
        %v748 = vadd.f32 %v630, %v735
        %v749 = vadd.f32 %v631, %v740
        %v750 = vadd.f32 %v632, %v745
        %v751 = vmax.f32 %v748, 0.0
        %v752 = vmax.f32 %v749, 0.0
        %v753 = vmax.f32 %v750, 0.0
        %v754 = vmul.f32 %v751, %v751
        %v755 = vmul.f32 %v752, %v752
        %v756 = vmul.f32 %v753, %v753
        %v757 = vsub.f32 %v751, 0.33
        %v758 = vsub.f32 %v752, 0.33
        %v759 = vsub.f32 %v753, 0.33
        %v760 = vmax.f32 %v757, 0.0
        %v761 = vmax.f32 %v758, 0.0
        %v762 = vmax.f32 %v759, 0.0
        %v763 = vmul.f32 %v760, %v760
        %v764 = vmul.f32 %v761, %v761
        %v765 = vmul.f32 %v762, %v762
        %v766 = vsub.f32 %v751, 0.66
        %v767 = vsub.f32 %v752, 0.66
        %v768 = vsub.f32 %v753, 0.66
        %v769 = vmax.f32 %v766, 0.0
        %v770 = vmax.f32 %v767, 0.0
        %v771 = vmax.f32 %v768, 0.0
        %v772 = vmul.f32 %v769, %v769
        %v773 = vmul.f32 %v770, %v770
        %v774 = vmul.f32 %v771, %v771
        %s775 = scalar_lea.vmem [#allocation2], 640
        %v776 = vld [vmem:[%s775] sm:$0xff]
        %v777 = vld [vmem:[%s775 + $0x8] sm:$0xff]
        %v778 = vld [vmem:[%s775 + $0x10] sm:$0xff]
        %v779 = vld [vmem:[%s775 + $0x18] sm:$0xff]
        %v780 = vld [vmem:[%s775 + $0x20] sm:$0xff]
        %v781 = vld [vmem:[%s775 + $0x28] sm:$0xff]
        %v782 = vld [vmem:[%s775 + $0x30] sm:$0xff]
        %v783 = vld [vmem:[%s775 + $0x38] sm:$0xff]
        %v784 = vld [vmem:[%s775 + $0x40] sm:$0xff]
        %v785 = vld [vmem:[%s775 + $0x48] sm:$0xff]
        %v786 = vld [vmem:[%s775 + $0x50] sm:$0xff]
        %v787 = vld [vmem:[%s775 + $0x58] sm:$0xff]
        %v788 = vld [vmem:[%s775 + $0x60] sm:$0xff]
        %v789 = vld [vmem:[%s775 + $0x68] sm:$0xff]
        %v790 = vld [vmem:[%s775 + $0x70] sm:$0xff]
        %v791 = vld [vmem:[%s775 + $0x78] sm:$0xff]
        %793 = vset.pattern.permute.xlu0 0
        %794 = vperm.xlu0 %793, %v751
        %v795 = vpop.permute.xlu0 %794
        %798 = vset.pattern.permute.xlu0 0
        %799 = vperm.xlu0 %798, %v752
        %v800 = vpop.permute.xlu0 %799
        %803 = vset.pattern.permute.xlu0 0
        %804 = vperm.xlu0 %803, %v753
        %v805 = vpop.permute.xlu0 %804
        %v807 = vmul.f32 %v795, %v751
        %v808 = vmul.f32 %v800, %v752
        %v809 = vmul.f32 %v805, %v753
        %s810 = scalar_lea.vmem [#allocation2], 768
        %v811 = vld [vmem:[%s810] sm:$0xff]
        %v812 = vld [vmem:[%s810 + $0x8] sm:$0xff]
        %v813 = vld [vmem:[%s810 + $0x10] sm:$0xff]
        %v814 = vld [vmem:[%s810 + $0x18] sm:$0xff]
        %v815 = vld [vmem:[%s810 + $0x20] sm:$0xff]
        %v816 = vld [vmem:[%s810 + $0x28] sm:$0xff]
        %v817 = vld [vmem:[%s810 + $0x30] sm:$0xff]
        %v818 = vld [vmem:[%s810 + $0x38] sm:$0xff]
        %v819 = vld [vmem:[%s810 + $0x40] sm:$0xff]
        %v820 = vld [vmem:[%s810 + $0x48] sm:$0xff]
        %v821 = vld [vmem:[%s810 + $0x50] sm:$0xff]
        %v822 = vld [vmem:[%s810 + $0x58] sm:$0xff]
        %v823 = vld [vmem:[%s810 + $0x60] sm:$0xff]
        %v824 = vld [vmem:[%s810 + $0x68] sm:$0xff]
        %v825 = vld [vmem:[%s810 + $0x70] sm:$0xff]
        %v826 = vld [vmem:[%s810 + $0x78] sm:$0xff]
        %827 = vmatprep.subr.mxu0 0.0
        %828 = vmatpush1.msra.mxu0 %v811
        %829 = vmatprep.subr.mxu0 0.0
        %830 = vmatpush1.msra.mxu0 %v812
        %831 = vmatprep.subr.mxu0 0.0
        %832 = vmatpush1.msra.mxu0 %v813
        %833 = vmatprep.subr.mxu0 0.0
        %834 = vmatpush1.msra.mxu0 %v814
        %835 = vmatprep.subr.mxu0 0.0
        %836 = vmatpush1.msra.mxu0 %v815
        %837 = vmatprep.subr.mxu0 0.0
        %838 = vmatpush1.msra.mxu0 %v816
        %839 = vmatprep.subr.mxu0 0.0
        %840 = vmatpush1.msra.mxu0 %v817
        %841 = vmatprep.subr.mxu0 0.0
        %842 = vmatpush1.msra.mxu0 %v818
        %843 = vmatprep.subr.mxu0 0.0
        %844 = vmatpush1.msra.mxu0 %v819
        %845 = vmatprep.subr.mxu0 0.0
        %846 = vmatpush1.msra.mxu0 %v820
        %847 = vmatprep.subr.mxu0 0.0
        %848 = vmatpush1.msra.mxu0 %v821
        %849 = vmatprep.subr.mxu0 0.0
        %850 = vmatpush1.msra.mxu0 %v822
        %851 = vmatprep.subr.mxu0 0.0
        %852 = vmatpush1.msra.mxu0 %v823
        %853 = vmatprep.subr.mxu0 0.0
        %854 = vmatpush1.msra.mxu0 %v824
        %855 = vmatprep.subr.mxu0 0.0
        %856 = vmatpush1.msra.mxu0 %v825
        %857 = vmatprep.subr.mxu0 0.0
        %858 = vmatpush1.msra.mxu0 %v826
        %859 = vmatprep.subr.mxu0 0.0
        %860 = vmatpush1.msra.mxu0 0.0
        %861 = vmatprep.subr.mxu0 0.0
        %862 = vmatpush1.msra.mxu0 0.0
        %863 = vmatprep.subr.mxu0 0.0
        %864 = vmatpush1.msra.mxu0 0.0
        %865 = vmatprep.subr.mxu0 0.0
        %866 = vmatpush1.msra.mxu0 0.0
        %867 = vmatprep.subr.mxu0 0.0
        %868 = vmatpush1.msra.mxu0 0.0
        %869 = vmatprep.subr.mxu0 0.0
        %870 = vmatpush1.msra.mxu0 0.0
        %871 = vmatprep.subr.mxu0 0.0
        %872 = vmatpush1.msra.mxu0 0.0
        %873 = vmatprep.subr.mxu0 0.0
        %874 = vmatpush1.msra.mxu0 0.0
        %875 = vmatprep.subr.mxu0 0.0
        %876 = vmatpush1.msra.mxu0 0.0
        %877 = vmatprep.subr.mxu0 0.0
        %878 = vmatpush1.msra.mxu0 0.0
        %879 = vmatprep.subr.mxu0 0.0
        %880 = vmatpush1.msra.mxu0 0.0
        %881 = vmatprep.subr.mxu0 0.0
        %882 = vmatpush1.msra.mxu0 0.0
        %883 = vmatprep.subr.mxu0 0.0
        %884 = vmatpush1.msra.mxu0 0.0
        %885 = vmatprep.subr.mxu0 0.0
        %886 = vmatpush1.msra.mxu0 0.0
        %887 = vmatprep.subr.mxu0 0.0
        %888 = vmatpush1.msra.mxu0 0.0
        %889 = vmatprep.subr.mxu0 0.0
        %890 = vmatpush1.msra.mxu0 0.0
        %891 = vmatprep.mubr.f32.mxu0 0.0
        %892 = vmatmul.mubr.f32.gmra.mrb[0].mxu0 %v807
        %v893 = vpop.f32.mrb[0].mxu0
        %v894 = vadd.f32 0.0, %v893
        %v895 = vpop.f32.mrb[0].mxu0
        %896 = vmatprep.mubr.f32.mxu0 0.0
        %897 = vmatmul.mubr.f32.gmra.mrb[0].mxu0 %v808
        %v898 = vpop.f32.mrb[0].mxu0
        %v899 = vadd.f32 0.0, %v898
        %v900 = vpop.f32.mrb[0].mxu0
        %901 = vmatprep.mubr.f32.mxu0 0.0
        %902 = vmatmul.mubr.f32.gmra.mrb[0].mxu0 %v809
        %v903 = vpop.f32.mrb[0].mxu0
        %v904 = vadd.f32 0.0, %v903
        %v905 = vpop.f32.mrb[0].mxu0
        %906 = vdwg.mxu0
        %907 = vmatprep.subr.mxu0 0.0
        %908 = vmatpush1.msra.mxu0 %v776
        %909 = vmatprep.subr.mxu0 0.0
        %910 = vmatpush1.msra.mxu0 %v777
        %911 = vmatprep.subr.mxu0 0.0
        %912 = vmatpush1.msra.mxu0 %v778
        %913 = vmatprep.subr.mxu0 0.0
        %914 = vmatpush1.msra.mxu0 %v779
        %915 = vmatprep.subr.mxu0 0.0
        %916 = vmatpush1.msra.mxu0 %v780
        %917 = vmatprep.subr.mxu0 0.0
        %918 = vmatpush1.msra.mxu0 %v781
        %919 = vmatprep.subr.mxu0 0.0
        %920 = vmatpush1.msra.mxu0 %v782
        %921 = vmatprep.subr.mxu0 0.0
        %922 = vmatpush1.msra.mxu0 %v783
        %923 = vmatprep.subr.mxu0 0.0
        %924 = vmatpush1.msra.mxu0 %v784
        %925 = vmatprep.subr.mxu0 0.0
        %926 = vmatpush1.msra.mxu0 %v785
        %927 = vmatprep.subr.mxu0 0.0
        %928 = vmatpush1.msra.mxu0 %v786
        %929 = vmatprep.subr.mxu0 0.0
        %930 = vmatpush1.msra.mxu0 %v787
        %931 = vmatprep.subr.mxu0 0.0
        %932 = vmatpush1.msra.mxu0 %v788
        %933 = vmatprep.subr.mxu0 0.0
        %934 = vmatpush1.msra.mxu0 %v789
        %935 = vmatprep.subr.mxu0 0.0
        %936 = vmatpush1.msra.mxu0 %v790
        %937 = vmatprep.subr.mxu0 0.0
        %938 = vmatpush1.msra.mxu0 %v791
        %939 = vmatprep.subr.mxu0 0.0
        %940 = vmatpush1.msra.mxu0 0.0
        %941 = vmatprep.subr.mxu0 0.0
        %942 = vmatpush1.msra.mxu0 0.0
        %943 = vmatprep.subr.mxu0 0.0
        %944 = vmatpush1.msra.mxu0 0.0
        %945 = vmatprep.subr.mxu0 0.0
        %946 = vmatpush1.msra.mxu0 0.0
        %947 = vmatprep.subr.mxu0 0.0
        %948 = vmatpush1.msra.mxu0 0.0
        %949 = vmatprep.subr.mxu0 0.0
        %950 = vmatpush1.msra.mxu0 0.0
        %951 = vmatprep.subr.mxu0 0.0
        %952 = vmatpush1.msra.mxu0 0.0
        %953 = vmatprep.subr.mxu0 0.0
        %954 = vmatpush1.msra.mxu0 0.0
        %955 = vmatprep.subr.mxu0 0.0
        %956 = vmatpush1.msra.mxu0 0.0
        %957 = vmatprep.subr.mxu0 0.0
        %958 = vmatpush1.msra.mxu0 0.0
        %959 = vmatprep.subr.mxu0 0.0
        %960 = vmatpush1.msra.mxu0 0.0
        %961 = vmatprep.subr.mxu0 0.0
        %962 = vmatpush1.msra.mxu0 0.0
        %963 = vmatprep.subr.mxu0 0.0
        %964 = vmatpush1.msra.mxu0 0.0
        %965 = vmatprep.subr.mxu0 0.0
        %966 = vmatpush1.msra.mxu0 0.0
        %967 = vmatprep.subr.mxu0 0.0
        %968 = vmatpush1.msra.mxu0 0.0
        %969 = vmatprep.subr.mxu0 0.0
        %970 = vmatpush1.msra.mxu0 0.0
        %971 = vmatprep.mubr.f32.mxu0 0.0
        %972 = vmatmul.mubr.f32.gmra.mrb[0].mxu0 %v751
        %v973 = vpop.f32.mrb[0].mxu0
        %v974 = vadd.f32 %v894, %v973
        %v975 = vpop.f32.mrb[0].mxu0
        %976 = vmatprep.mubr.f32.mxu0 0.0
        %977 = vmatmul.mubr.f32.gmra.mrb[0].mxu0 %v752
        %v978 = vpop.f32.mrb[0].mxu0
        %v979 = vadd.f32 %v899, %v978
        %v980 = vpop.f32.mrb[0].mxu0
        %981 = vmatprep.mubr.f32.mxu0 0.0
        %982 = vmatmul.mubr.f32.gmra.mrb[0].mxu0 %v753
        %v983 = vpop.f32.mrb[0].mxu0
        %v984 = vadd.f32 %v904, %v983
        %v985 = vpop.f32.mrb[0].mxu0
        %986 = vdwg.mxu0
        %988 = vset.pattern.permute.xlu0 0
        %989 = vperm.xlu0 %988, %v754
        %v990 = vpop.permute.xlu0 %989
        %993 = vset.pattern.permute.xlu0 0
        %994 = vperm.xlu0 %993, %v755
        %v995 = vpop.permute.xlu0 %994
        %998 = vset.pattern.permute.xlu0 0
        %999 = vperm.xlu0 %998, %v756
        %v1000 = vpop.permute.xlu0 %999
        %v1002 = vmul.f32 %v990, %v751
        %v1003 = vmul.f32 %v995, %v752
        %v1004 = vmul.f32 %v1000, %v753
        %s1005 = scalar_lea.vmem [#allocation2], 896
        %v1006 = vld [vmem:[%s1005] sm:$0xff]
        %v1007 = vld [vmem:[%s1005 + $0x8] sm:$0xff]
        %v1008 = vld [vmem:[%s1005 + $0x10] sm:$0xff]
        %v1009 = vld [vmem:[%s1005 + $0x18] sm:$0xff]
        %v1010 = vld [vmem:[%s1005 + $0x20] sm:$0xff]
        %v1011 = vld [vmem:[%s1005 + $0x28] sm:$0xff]
        %v1012 = vld [vmem:[%s1005 + $0x30] sm:$0xff]
        %v1013 = vld [vmem:[%s1005 + $0x38] sm:$0xff]
        %v1014 = vld [vmem:[%s1005 + $0x40] sm:$0xff]
        %v1015 = vld [vmem:[%s1005 + $0x48] sm:$0xff]
        %v1016 = vld [vmem:[%s1005 + $0x50] sm:$0xff]
        %v1017 = vld [vmem:[%s1005 + $0x58] sm:$0xff]
        %v1018 = vld [vmem:[%s1005 + $0x60] sm:$0xff]
        %v1019 = vld [vmem:[%s1005 + $0x68] sm:$0xff]
        %v1020 = vld [vmem:[%s1005 + $0x70] sm:$0xff]
        %v1021 = vld [vmem:[%s1005 + $0x78] sm:$0xff]
        %1022 = vmatprep.subr.mxu0 0.0
        %1023 = vmatpush1.msra.mxu0 %v1006
        %1024 = vmatprep.subr.mxu0 0.0
        %1025 = vmatpush1.msra.mxu0 %v1007
        %1026 = vmatprep.subr.mxu0 0.0
        %1027 = vmatpush1.msra.mxu0 %v1008
        %1028 = vmatprep.subr.mxu0 0.0
        %1029 = vmatpush1.msra.mxu0 %v1009
        %1030 = vmatprep.subr.mxu0 0.0
        %1031 = vmatpush1.msra.mxu0 %v1010
        %1032 = vmatprep.subr.mxu0 0.0
        %1033 = vmatpush1.msra.mxu0 %v1011
        %1034 = vmatprep.subr.mxu0 0.0
        %1035 = vmatpush1.msra.mxu0 %v1012
        %1036 = vmatprep.subr.mxu0 0.0
        %1037 = vmatpush1.msra.mxu0 %v1013
        %1038 = vmatprep.subr.mxu0 0.0
        %1039 = vmatpush1.msra.mxu0 %v1014
        %1040 = vmatprep.subr.mxu0 0.0
        %1041 = vmatpush1.msra.mxu0 %v1015
        %1042 = vmatprep.subr.mxu0 0.0
        %1043 = vmatpush1.msra.mxu0 %v1016
        %1044 = vmatprep.subr.mxu0 0.0
        %1045 = vmatpush1.msra.mxu0 %v1017
        %1046 = vmatprep.subr.mxu0 0.0
        %1047 = vmatpush1.msra.mxu0 %v1018
        %1048 = vmatprep.subr.mxu0 0.0
        %1049 = vmatpush1.msra.mxu0 %v1019
        %1050 = vmatprep.subr.mxu0 0.0
        %1051 = vmatpush1.msra.mxu0 %v1020
        %1052 = vmatprep.subr.mxu0 0.0
        %1053 = vmatpush1.msra.mxu0 %v1021
        %1054 = vmatprep.subr.mxu0 0.0
        %1055 = vmatpush1.msra.mxu0 0.0
        %1056 = vmatprep.subr.mxu0 0.0
        %1057 = vmatpush1.msra.mxu0 0.0
        %1058 = vmatprep.subr.mxu0 0.0
        %1059 = vmatpush1.msra.mxu0 0.0
        %1060 = vmatprep.subr.mxu0 0.0
        %1061 = vmatpush1.msra.mxu0 0.0
        %1062 = vmatprep.subr.mxu0 0.0
        %1063 = vmatpush1.msra.mxu0 0.0
        %1064 = vmatprep.subr.mxu0 0.0
        %1065 = vmatpush1.msra.mxu0 0.0
        %1066 = vmatprep.subr.mxu0 0.0
        %1067 = vmatpush1.msra.mxu0 0.0
        %1068 = vmatprep.subr.mxu0 0.0
        %1069 = vmatpush1.msra.mxu0 0.0
        %1070 = vmatprep.subr.mxu0 0.0
        %1071 = vmatpush1.msra.mxu0 0.0
        %1072 = vmatprep.subr.mxu0 0.0
        %1073 = vmatpush1.msra.mxu0 0.0
        %1074 = vmatprep.subr.mxu0 0.0
        %1075 = vmatpush1.msra.mxu0 0.0
        %1076 = vmatprep.subr.mxu0 0.0
        %1077 = vmatpush1.msra.mxu0 0.0
        %1078 = vmatprep.subr.mxu0 0.0
        %1079 = vmatpush1.msra.mxu0 0.0
        %1080 = vmatprep.subr.mxu0 0.0
        %1081 = vmatpush1.msra.mxu0 0.0
        %1082 = vmatprep.subr.mxu0 0.0
        %1083 = vmatpush1.msra.mxu0 0.0
        %1084 = vmatprep.subr.mxu0 0.0
        %1085 = vmatpush1.msra.mxu0 0.0
        %1086 = vmatprep.mubr.f32.mxu0 0.0
        %1087 = vmatmul.mubr.f32.gmra.mrb[0].mxu0 %v1002
        %v1088 = vpop.f32.mrb[0].mxu0
        %v1089 = vadd.f32 0.0, %v1088
        %v1090 = vpop.f32.mrb[0].mxu0
        %1091 = vmatprep.mubr.f32.mxu0 0.0
        %1092 = vmatmul.mubr.f32.gmra.mrb[0].mxu0 %v1003
        %v1093 = vpop.f32.mrb[0].mxu0
        %v1094 = vadd.f32 0.0, %v1093
        %v1095 = vpop.f32.mrb[0].mxu0
        %1096 = vmatprep.mubr.f32.mxu0 0.0
        %1097 = vmatmul.mubr.f32.gmra.mrb[0].mxu0 %v1004
        %v1098 = vpop.f32.mrb[0].mxu0
        %v1099 = vadd.f32 0.0, %v1098
        %v1100 = vpop.f32.mrb[0].mxu0
        %1101 = vdwg.mxu0
        %v1102 = vadd.f32 %v974, %v1089
        %v1103 = vadd.f32 %v979, %v1094
        %v1104 = vadd.f32 %v984, %v1099
        %1106 = vset.pattern.permute.xlu0 0
        %1107 = vperm.xlu0 %1106, %v763
        %v1108 = vpop.permute.xlu0 %1107
        %1111 = vset.pattern.permute.xlu0 0
        %1112 = vperm.xlu0 %1111, %v764
        %v1113 = vpop.permute.xlu0 %1112
        %1116 = vset.pattern.permute.xlu0 0
        %1117 = vperm.xlu0 %1116, %v765
        %v1118 = vpop.permute.xlu0 %1117
        %v1120 = vmul.f32 %v1108, %v751
        %v1121 = vmul.f32 %v1113, %v752
        %v1122 = vmul.f32 %v1118, %v753
        %s1123 = scalar_lea.vmem [#allocation2], 1024
        %v1124 = vld [vmem:[%s1123] sm:$0xff]
        %v1125 = vld [vmem:[%s1123 + $0x8] sm:$0xff]
        %v1126 = vld [vmem:[%s1123 + $0x10] sm:$0xff]
        %v1127 = vld [vmem:[%s1123 + $0x18] sm:$0xff]
        %v1128 = vld [vmem:[%s1123 + $0x20] sm:$0xff]
        %v1129 = vld [vmem:[%s1123 + $0x28] sm:$0xff]
        %v1130 = vld [vmem:[%s1123 + $0x30] sm:$0xff]
        %v1131 = vld [vmem:[%s1123 + $0x38] sm:$0xff]
        %v1132 = vld [vmem:[%s1123 + $0x40] sm:$0xff]
        %v1133 = vld [vmem:[%s1123 + $0x48] sm:$0xff]
        %v1134 = vld [vmem:[%s1123 + $0x50] sm:$0xff]
        %v1135 = vld [vmem:[%s1123 + $0x58] sm:$0xff]
        %v1136 = vld [vmem:[%s1123 + $0x60] sm:$0xff]
        %v1137 = vld [vmem:[%s1123 + $0x68] sm:$0xff]
        %v1138 = vld [vmem:[%s1123 + $0x70] sm:$0xff]
        %v1139 = vld [vmem:[%s1123 + $0x78] sm:$0xff]
        %1140 = vmatprep.subr.mxu0 0.0
        %1141 = vmatpush1.msra.mxu0 %v1124
        %1142 = vmatprep.subr.mxu0 0.0
        %1143 = vmatpush1.msra.mxu0 %v1125
        %1144 = vmatprep.subr.mxu0 0.0
        %1145 = vmatpush1.msra.mxu0 %v1126
        %1146 = vmatprep.subr.mxu0 0.0
        %1147 = vmatpush1.msra.mxu0 %v1127
        %1148 = vmatprep.subr.mxu0 0.0
        %1149 = vmatpush1.msra.mxu0 %v1128
        %1150 = vmatprep.subr.mxu0 0.0
        %1151 = vmatpush1.msra.mxu0 %v1129
        %1152 = vmatprep.subr.mxu0 0.0
        %1153 = vmatpush1.msra.mxu0 %v1130
        %1154 = vmatprep.subr.mxu0 0.0
        %1155 = vmatpush1.msra.mxu0 %v1131
        %1156 = vmatprep.subr.mxu0 0.0
        %1157 = vmatpush1.msra.mxu0 %v1132
        %1158 = vmatprep.subr.mxu0 0.0
        %1159 = vmatpush1.msra.mxu0 %v1133
        %1160 = vmatprep.subr.mxu0 0.0
        %1161 = vmatpush1.msra.mxu0 %v1134
        %1162 = vmatprep.subr.mxu0 0.0
        %1163 = vmatpush1.msra.mxu0 %v1135
        %1164 = vmatprep.subr.mxu0 0.0
        %1165 = vmatpush1.msra.mxu0 %v1136
        %1166 = vmatprep.subr.mxu0 0.0
        %1167 = vmatpush1.msra.mxu0 %v1137
        %1168 = vmatprep.subr.mxu0 0.0
        %1169 = vmatpush1.msra.mxu0 %v1138
        %1170 = vmatprep.subr.mxu0 0.0
        %1171 = vmatpush1.msra.mxu0 %v1139
        %1172 = vmatprep.subr.mxu0 0.0
        %1173 = vmatpush1.msra.mxu0 0.0
        %1174 = vmatprep.subr.mxu0 0.0
        %1175 = vmatpush1.msra.mxu0 0.0
        %1176 = vmatprep.subr.mxu0 0.0
        %1177 = vmatpush1.msra.mxu0 0.0
        %1178 = vmatprep.subr.mxu0 0.0
        %1179 = vmatpush1.msra.mxu0 0.0
        %1180 = vmatprep.subr.mxu0 0.0
        %1181 = vmatpush1.msra.mxu0 0.0
        %1182 = vmatprep.subr.mxu0 0.0
        %1183 = vmatpush1.msra.mxu0 0.0
        %1184 = vmatprep.subr.mxu0 0.0
        %1185 = vmatpush1.msra.mxu0 0.0
        %1186 = vmatprep.subr.mxu0 0.0
        %1187 = vmatpush1.msra.mxu0 0.0
        %1188 = vmatprep.subr.mxu0 0.0
        %1189 = vmatpush1.msra.mxu0 0.0
        %1190 = vmatprep.subr.mxu0 0.0
        %1191 = vmatpush1.msra.mxu0 0.0
        %1192 = vmatprep.subr.mxu0 0.0
        %1193 = vmatpush1.msra.mxu0 0.0
        %1194 = vmatprep.subr.mxu0 0.0
        %1195 = vmatpush1.msra.mxu0 0.0
        %1196 = vmatprep.subr.mxu0 0.0
        %1197 = vmatpush1.msra.mxu0 0.0
        %1198 = vmatprep.subr.mxu0 0.0
        %1199 = vmatpush1.msra.mxu0 0.0
        %1200 = vmatprep.subr.mxu0 0.0
        %1201 = vmatpush1.msra.mxu0 0.0
        %1202 = vmatprep.subr.mxu0 0.0
        %1203 = vmatpush1.msra.mxu0 0.0
        %1204 = vmatprep.mubr.f32.mxu0 0.0
        %1205 = vmatmul.mubr.f32.gmra.mrb[0].mxu0 %v1120
        %v1206 = vpop.f32.mrb[0].mxu0
        %v1207 = vadd.f32 0.0, %v1206
        %v1208 = vpop.f32.mrb[0].mxu0
        %1209 = vmatprep.mubr.f32.mxu0 0.0
        %1210 = vmatmul.mubr.f32.gmra.mrb[0].mxu0 %v1121
        %v1211 = vpop.f32.mrb[0].mxu0
        %v1212 = vadd.f32 0.0, %v1211
        %v1213 = vpop.f32.mrb[0].mxu0
        %1214 = vmatprep.mubr.f32.mxu0 0.0
        %1215 = vmatmul.mubr.f32.gmra.mrb[0].mxu0 %v1122
        %v1216 = vpop.f32.mrb[0].mxu0
        %v1217 = vadd.f32 0.0, %v1216
        %v1218 = vpop.f32.mrb[0].mxu0
        %1219 = vdwg.mxu0
        %v1220 = vadd.f32 %v1102, %v1207
        %v1221 = vadd.f32 %v1103, %v1212
        %v1222 = vadd.f32 %v1104, %v1217
        %1224 = vset.pattern.permute.xlu0 0
        %1225 = vperm.xlu0 %1224, %v772
        %v1226 = vpop.permute.xlu0 %1225
        %1229 = vset.pattern.permute.xlu0 0
        %1230 = vperm.xlu0 %1229, %v773
        %v1231 = vpop.permute.xlu0 %1230
        %1234 = vset.pattern.permute.xlu0 0
        %1235 = vperm.xlu0 %1234, %v774
        %v1236 = vpop.permute.xlu0 %1235
        %v1238 = vmul.f32 %v1226, %v751
        %v1239 = vmul.f32 %v1231, %v752
        %v1240 = vmul.f32 %v1236, %v753
        %s1241 = scalar_lea.vmem [#allocation2], 1152
        %v1242 = vld [vmem:[%s1241] sm:$0xff]
        %v1243 = vld [vmem:[%s1241 + $0x8] sm:$0xff]
        %v1244 = vld [vmem:[%s1241 + $0x10] sm:$0xff]
        %v1245 = vld [vmem:[%s1241 + $0x18] sm:$0xff]
        %v1246 = vld [vmem:[%s1241 + $0x20] sm:$0xff]
        %v1247 = vld [vmem:[%s1241 + $0x28] sm:$0xff]
        %v1248 = vld [vmem:[%s1241 + $0x30] sm:$0xff]
        %v1249 = vld [vmem:[%s1241 + $0x38] sm:$0xff]
        %v1250 = vld [vmem:[%s1241 + $0x40] sm:$0xff]
        %v1251 = vld [vmem:[%s1241 + $0x48] sm:$0xff]
        %v1252 = vld [vmem:[%s1241 + $0x50] sm:$0xff]
        %v1253 = vld [vmem:[%s1241 + $0x58] sm:$0xff]
        %v1254 = vld [vmem:[%s1241 + $0x60] sm:$0xff]
        %v1255 = vld [vmem:[%s1241 + $0x68] sm:$0xff]
        %v1256 = vld [vmem:[%s1241 + $0x70] sm:$0xff]
        %v1257 = vld [vmem:[%s1241 + $0x78] sm:$0xff]
        %1258 = vmatprep.subr.mxu0 0.0
        %1259 = vmatpush1.msra.mxu0 %v1242
        %1260 = vmatprep.subr.mxu0 0.0
        %1261 = vmatpush1.msra.mxu0 %v1243
        %1262 = vmatprep.subr.mxu0 0.0
        %1263 = vmatpush1.msra.mxu0 %v1244
        %1264 = vmatprep.subr.mxu0 0.0
        %1265 = vmatpush1.msra.mxu0 %v1245
        %1266 = vmatprep.subr.mxu0 0.0
        %1267 = vmatpush1.msra.mxu0 %v1246
        %1268 = vmatprep.subr.mxu0 0.0
        %1269 = vmatpush1.msra.mxu0 %v1247
        %1270 = vmatprep.subr.mxu0 0.0
        %1271 = vmatpush1.msra.mxu0 %v1248
        %1272 = vmatprep.subr.mxu0 0.0
        %1273 = vmatpush1.msra.mxu0 %v1249
        %1274 = vmatprep.subr.mxu0 0.0
        %1275 = vmatpush1.msra.mxu0 %v1250
        %1276 = vmatprep.subr.mxu0 0.0
        %1277 = vmatpush1.msra.mxu0 %v1251
        %1278 = vmatprep.subr.mxu0 0.0
        %1279 = vmatpush1.msra.mxu0 %v1252
        %1280 = vmatprep.subr.mxu0 0.0
        %1281 = vmatpush1.msra.mxu0 %v1253
        %1282 = vmatprep.subr.mxu0 0.0
        %1283 = vmatpush1.msra.mxu0 %v1254
        %1284 = vmatprep.subr.mxu0 0.0
        %1285 = vmatpush1.msra.mxu0 %v1255
        %1286 = vmatprep.subr.mxu0 0.0
        %1287 = vmatpush1.msra.mxu0 %v1256
        %1288 = vmatprep.subr.mxu0 0.0
        %1289 = vmatpush1.msra.mxu0 %v1257
        %1290 = vmatprep.subr.mxu0 0.0
        %1291 = vmatpush1.msra.mxu0 0.0
        %1292 = vmatprep.subr.mxu0 0.0
        %1293 = vmatpush1.msra.mxu0 0.0
        %1294 = vmatprep.subr.mxu0 0.0
        %1295 = vmatpush1.msra.mxu0 0.0
        %1296 = vmatprep.subr.mxu0 0.0
        %1297 = vmatpush1.msra.mxu0 0.0
        %1298 = vmatprep.subr.mxu0 0.0
        %1299 = vmatpush1.msra.mxu0 0.0
        %1300 = vmatprep.subr.mxu0 0.0
        %1301 = vmatpush1.msra.mxu0 0.0
        %1302 = vmatprep.subr.mxu0 0.0
        %1303 = vmatpush1.msra.mxu0 0.0
        %1304 = vmatprep.subr.mxu0 0.0
        %1305 = vmatpush1.msra.mxu0 0.0
        %1306 = vmatprep.subr.mxu0 0.0
        %1307 = vmatpush1.msra.mxu0 0.0
        %1308 = vmatprep.subr.mxu0 0.0
        %1309 = vmatpush1.msra.mxu0 0.0
        %1310 = vmatprep.subr.mxu0 0.0
        %1311 = vmatpush1.msra.mxu0 0.0
        %1312 = vmatprep.subr.mxu0 0.0
        %1313 = vmatpush1.msra.mxu0 0.0
        %1314 = vmatprep.subr.mxu0 0.0
        %1315 = vmatpush1.msra.mxu0 0.0
        %1316 = vmatprep.subr.mxu0 0.0
        %1317 = vmatpush1.msra.mxu0 0.0
        %1318 = vmatprep.subr.mxu0 0.0
        %1319 = vmatpush1.msra.mxu0 0.0
        %1320 = vmatprep.subr.mxu0 0.0
        %1321 = vmatpush1.msra.mxu0 0.0
        %1322 = vmatprep.mubr.f32.mxu0 0.0
        %1323 = vmatmul.mubr.f32.gmra.mrb[0].mxu0 %v1238
        %v1324 = vpop.f32.mrb[0].mxu0
        %v1325 = vadd.f32 0.0, %v1324
        %v1326 = vpop.f32.mrb[0].mxu0
        %1327 = vmatprep.mubr.f32.mxu0 0.0
        %1328 = vmatmul.mubr.f32.gmra.mrb[0].mxu0 %v1239
        %v1329 = vpop.f32.mrb[0].mxu0
        %v1330 = vadd.f32 0.0, %v1329
        %v1331 = vpop.f32.mrb[0].mxu0
        %1332 = vmatprep.mubr.f32.mxu0 0.0
        %1333 = vmatmul.mubr.f32.gmra.mrb[0].mxu0 %v1240
        %v1334 = vpop.f32.mrb[0].mxu0
        %v1335 = vadd.f32 0.0, %v1334
        %v1336 = vpop.f32.mrb[0].mxu0
        %1337 = vdwg.mxu0
        %v1338 = vadd.f32 %v1220, %v1325
        %v1339 = vadd.f32 %v1221, %v1330
        %v1340 = vadd.f32 %v1222, %v1335
        %1341 = vst [vmem:[%s160] sm:$0xff] %v1338
        %1342 = vst [vmem:[%s160 + $0x8] sm:$0xff] %v1339
        %1343 = vst [vmem:[%s160 + $0x10] sm:$0xff] %v1340
        %s1344 = smul.u32 3, %s14
        %p1345 = scmp.lt.s32.totalorder %s1344, 5
        %s1346 = scalar_select %p1345, %s1344, 5
        %s1347 = smul.addr %s1346, 8
        %s1348 = scalar_lea.vmem %s2, %s1347
        // Predicated region
        $region33: #{q_head_forward.1} parent=27 // pred_check
          %p1349 = pneg %p79
        $region34: #{q_head_forward.1} parent=27 // pred_check_branch
          %1351 = sbr.rel (%p1349) target = $region36
        $region35: #{q_head_forward.1} parent=27 // pred_region
          %s1352 = smul.u32 3, %s14
        $region36: #{q_head_forward.1} parent=27 // pred_fallthru
          _
      $region28: #{q_head_forward.1} parent=5 // pred_fallthru
        _
      %p1353 = scmp.le.s32.totalorder 2, %s9
      // Predicated region
      $region37: #{q_head_forward.1} parent=5 // pred_check
        %p1354 = pneg %p1353
      $region38: #{q_head_forward.1} parent=5 // pred_check_branch
        %1356 = sbr.rel (%p1354) target = $region40
      $region39: #{q_head_forward.1} parent=5 // pred_region
        %s1357 = ssub.s32 %s9, 2
        // Predicated region
        $region41: #{q_head_forward.1} parent=39 // pred_check
          %p1358 = pneg %p85
        $region42: #{q_head_forward.1} parent=39 // pred_check_branch
          %1360 = sbr.rel (%p1358) target = $region44
        $region43: #{q_head_forward.1} parent=39 // pred_region
          %s1361 = smul.u32 3, %s15
          %p1362 = scmp.lt.s32.totalorder %s1361, 5
          %s1363 = scalar_select %p1362, %s1361, 5
          %s1364 = smul.addr %s1363, 8
          %s1365 = scalar_lea.vmem %s2, %s1364
        $region44: #{q_head_forward.1} parent=39 // pred_fallthru
          _
      $region40: #{q_head_forward.1} parent=5 // pred_fallthru
        _
    $region6: #{q_head_forward.1} parent=1 // loop_footer
      %s13 = sadd.s32 1, %s9
    $region7: #{q_head_forward.1} parent=1 // loop_footer_branch
      %8 = sbr.rel target = $region3
    $region8: #{q_head_forward.1} parent=1 // loop_exit
      _
    %1366 = vsyncpa [#allocation3], 1
    %s1367 = scalar_lea.sflag [#allocation3], 1
    %1368 = vsyncpa %s1367, 1

</llo_original>
